<compile_context>
chip_gen: v7x
topology: tpu7x:2x2x1
jax: 0.10.0
libtpu: 0.0.40
codegen_flags: <defaults>
</compile_context>

<pallas_src>
import functools

import jax
import jax.numpy as jnp
from jax import lax
from jax.experimental import pallas as pl
from jax.experimental.pallas import tpu as pltpu

# Neighbor offsets (top-left corner of the 3x3 window) in the order the PyTorch filters
# enumerate them; (1, 1) -- the center itself -- is excluded.
_OFFSETS = ((0, 0), (0, 1), (0, 2), (1, 0), (1, 2), (2, 0), (2, 1), (2, 2))

# Sublane alignment per dtype itemsize (f32 -> 8 rows, bf16 -> 16, int8/fp8 -> 32).
_ROW_ALIGN = {4: 8, 2: 16, 1: 32}


def _tile_partial_sum(xs, xt, row_limit=None):
    """Fused local-structure-cosine squared-difference sum for one (C, R, W) tile pair.

    xs, xt    : (C, R, W) float32 student / teacher tiles (R rows, including halo rows).
    row_limit : optional traced int32; only interior center rows rr < row_limit are counted
                (used to mask halo / duplicated rows when row-tiling).
    Returns a scalar float32: sum over counted pixels and the 8 offsets of
        (cos_s[k] - cos_t[k])**2.
    """
    C, R, W = xs.shape
    # One squared-norm reduction + one rsqrt per tile (shared by center and all neighbours).
    inv_s = lax.rsqrt(jnp.sum(xs * xs, axis=0))      # (R, W)
    inv_t = lax.rsqrt(jnp.sum(xt * xt, axis=0))
    xs_c, xt_c = xs[:, 1:R - 1, 1:W - 1], xt[:, 1:R - 1, 1:W - 1]
    s_ic, t_ic = inv_s[1:R - 1, 1:W - 1], inv_t[1:R - 1, 1:W - 1]

    acc = jnp.zeros((R - 2, W - 2), jnp.float32)
    for du, dv in _OFFSETS:                          # fused: no (8, R-2, W-2) intermediates
        gs = jnp.sum(xs_c * xs[:, du:du + R - 2, dv:dv + W - 2], axis=0) \
            * (s_ic * inv_s[du:du + R - 2, dv:dv + W - 2])
        gt = jnp.sum(xt_c * xt[:, du:du + R - 2, dv:dv + W - 2], axis=0) \
            * (t_ic * inv_t[du:du + R - 2, dv:dv + W - 2])
        d = gs - gt
        acc = acc + d * d

    if row_limit is None:
        return jnp.sum(acc)
    rows = lax.broadcasted_iota(jnp.int32, acc.shape, 0)
    return jnp.sum(jnp.where(rows < row_limit, acc, 0.0))


def _ls_cos_kernel_full(xs_ref, xt_ref, out_ref):
    """Whole-image path: one full (C, H, W) image per grid step (grid = (B,))."""
    xs = xs_ref[0].astype(jnp.float32)
    xt = xt_ref[0].astype(jnp.float32)
    part = _tile_partial_sum(xs, xt)
    out_ref[...] = jnp.full(out_ref.shape, part, jnp.float32)


def _ls_cos_kernel_tiled(xs_ref, xsh_ref, xt_ref, xth_ref, out_ref,
                         xs_loc, xt_loc, *, tile_h, H):
    """Row-tiled path: main block (1, C, tile_h, W) + halo block (1, C, halo, W) per array.

    Grid is (B, n_tiles); tile i owns the output centers in global rows
    [i*tile_h + 1, (i+1)*tile_h] clipped to [1, H-2]; the halo rows below supply the bottom
    neighbours of the tile's last owned centers.
    """
    i = pl.program_id(1)
    T = tile_h
    # Assemble the f32 local tiles in VMEM scratch (cast from the wire dtype exactly once).
    xs_loc[:, :T, :] = xs_ref[0].astype(jnp.float32)
    xs_loc[:, T:, :] = xsh_ref[0].astype(jnp.float32)
    xt_loc[:, :T, :] = xt_ref[0].astype(jnp.float32)
    xt_loc[:, T:, :] = xth_ref[0].astype(jnp.float32)
    # Interior center rows owned by this tile: rr < min(T, H - 2 - i*T).
    limit = jnp.minimum(jnp.int32(T), jnp.int32(H - 2) - i * jnp.int32(T))
    part = _tile_partial_sum(xs_loc[...], xt_loc[...], row_limit=limit)
    out_ref[...] = jnp.full(out_ref.shape, part, jnp.float32)


def _auto_tile_h(H, C, W, itemsize):
    """Largest row tile that divides H, respects the sublane alignment of the wire dtype,
    and keeps one f32 working tile around ~2 MiB.  Falls back to the full height."""
    row_align = _ROW_ALIGN.get(itemsize, 8)
    budget_rows = max(row_align, (2 * 1024 * 1024) // max(C * W * 4, 1))
    if H <= budget_rows or H % row_align != 0:
        return H
    best = H
    t = row_align
    while t < H:
        if H % t == 0 and t <= budget_rows:
            best = t
        t += row_align
    return best


def criterion_ls_cos(preds, soft, tile_h=None):
    """Mirrors CriterionLSCos.forward(preds, soft): consumes preds[1] and soft[1] (NCHW)."""
    xs, xt = preds[1], soft[1]
    assert xs.shape == xt.shape, (xs.shape, xt.shape)
    B, C, H, W = xs.shape
    assert H >= 3 and W >= 3, "3x3 local structure needs H, W >= 3"
    count = B * 8 * (H - 2) * (W - 2)                       # MSELoss 'mean' denominator

    itemsize = jnp.dtype(xs.dtype).itemsize
    row_align = _ROW_ALIGN.get(itemsize, 8)
    if tile_h is None:
        tile_h = _auto_tile_h(H, C, W, itemsize)
    use_tiling = (row_align <= tile_h < H and H % tile_h == 0
                  and tile_h % row_align == 0)

    if use_tiling:
        T, halo = tile_h, row_align
        n_tiles = H // T
        rows = T + halo
    else:
        T, halo, n_tiles, rows = H, 0, 1, H

    # Scoped-VMEM budget: native-dtype input blocks (double buffered) + f32 scratch tiles
    # + in-flight f32 temporaries; clamped under v7x's 64 MiB physical VMEM.
    est = 8 * C * rows * W * itemsize + 8 * C * rows * W * 4
    vmem_limit = int(min(64 * 2 ** 20, max(32 * 2 ** 20, est)))

    if use_tiling:
        main_spec = pl.BlockSpec((1, C, T, W), lambda b, i: (b, 0, i, 0))
        halo_spec = pl.BlockSpec(
            (1, C, halo, W),
            lambda b, i: (b, 0, jnp.minimum((i + 1) * (T // halo), H // halo - 1), 0))
        partials = pl.pallas_call(
            functools.partial(_ls_cos_kernel_tiled, tile_h=T, H=H),
            out_shape=jax.ShapeDtypeStruct((B, n_tiles, 8, 128), jnp.float32),
            grid_spec=pltpu.PrefetchScalarGridSpec(
                num_scalar_prefetch=0,
                grid=(B, n_tiles),
                in_specs=[main_spec, halo_spec, main_spec, halo_spec],
                out_specs=pl.BlockSpec((1, 1, 8, 128), lambda b, i: (b, i, 0, 0)),
                scratch_shapes=[pltpu.VMEM((C, rows, W), jnp.float32),
                                pltpu.VMEM((C, rows, W), jnp.float32)]),
            compiler_params=pltpu.CompilerParams(
                dimension_semantics=("parallel", "parallel"),
                vmem_limit_bytes=vmem_limit),
        )(xs, xs, xt, xt)
    else:
        full_spec = pl.BlockSpec((1, C, H, W), lambda b: (b, 0, 0, 0))
        partials = pl.pallas_call(
            _ls_cos_kernel_full,
            out_shape=jax.ShapeDtypeStruct((B, 1, 8, 128), jnp.float32),
            grid_spec=pltpu.PrefetchScalarGridSpec(
                num_scalar_prefetch=0,
                grid=(B,),
                in_specs=[full_spec, full_spec],
                out_specs=pl.BlockSpec((1, 1, 8, 128), lambda b: (b, 0, 0, 0))),
            compiler_params=pltpu.CompilerParams(
                dimension_semantics=("parallel",),
                vmem_limit_bytes=vmem_limit),
        )(xs, xt)

    # Tiny final reduction / MSE mean in plain JAX (keeps every grid step independent).
    return jnp.sum(partials[:, :, 0, 0]) / jnp.float32(count)


def _ref_loss(xs, xt):
    """Pure-JAX reference of CriterionLSCos (batched, mirrors the torch math)."""
    def structure_maps(x):
        x = x.astype(jnp.float32)
        _, _, H, W = x.shape
        inv = lax.rsqrt(jnp.sum(x * x, axis=1))               # (B, H, W)
        xc = x[:, :, 1:H - 1, 1:W - 1]
        ic = inv[:, 1:H - 1, 1:W - 1]
        maps = []
        for du, dv in _OFFSETS:
            dot = jnp.sum(xc * x[:, :, du:du + H - 2, dv:dv + W - 2], axis=1)
            maps.append(dot * ic * inv[:, du:du + H - 2, dv:dv + W - 2])
        return jnp.stack(maps, axis=1)                         # (B, 8, H-2, W-2)

    gs, gt = structure_maps(xs), structure_maps(xt)
    return jnp.mean((gs - gt) ** 2)


if __name__ == "__main__":
    key = jax.random.PRNGKey(0)
    k1, k2, k3, k4 = jax.random.split(key, 4)
    B, C, H, W = 2, 4, 16, 16
    # preds / soft are lists of feature maps; index [1] is consumed, as in the module.
    preds = [jax.random.normal(k1, (B, C, H, W), jnp.float32),
             jax.random.normal(k2, (B, C, H, W), jnp.float32)]
    soft = [jax.random.normal(k3, (B, C, H, W), jnp.float32),
            jax.random.normal(k4, (B, C, H, W), jnp.float32)]

    ref = _ref_loss(preds[1], soft[1])

    # Row-tiled path (halo blocks, grid (B, n_tiles), both grid axes parallel).
    loss_tiled = criterion_ls_cos(preds, soft, tile_h=8)
    jax.block_until_ready(loss_tiled)
    assert jnp.allclose(loss_tiled, ref, rtol=1e-4, atol=1e-5), (loss_tiled, ref)

    # Whole-image path (auto tile selection keeps a single tile at this small size).
    loss_full = criterion_ls_cos(preds, soft)
    jax.block_until_ready(loss_full)
    assert jnp.allclose(loss_full, ref, rtol=1e-4, atol=1e-5), (loss_full, ref)

    # Native bf16 on the wire; the cast to f32 happens inside the kernel.
    preds_bf = [p.astype(jnp.bfloat16) for p in preds]
    soft_bf = [s.astype(jnp.bfloat16) for s in soft]
    loss_bf16 = criterion_ls_cos(preds_bf, soft_bf)
    jax.block_until_ready(loss_bf16)
    ref_bf16 = _ref_loss(preds_bf[1], soft_bf[1])
    assert jnp.allclose(loss_bf16, ref_bf16, rtol=1e-3, atol=1e-4), (loss_bf16, ref_bf16)

    print("KERNEL_OK")
</pallas_src>

<mosaic_0001>
module attributes {stable_mosaic.version = 11 : i64} {
  func.func @_ls_cos_kernel_tiled(%arg0: i32, %arg1: i32, %arg2: memref<1x4x8x16xf32, #tpu.memory_space<vmem>>, %arg3: memref<1x4x8x16xf32, #tpu.memory_space<vmem>>, %arg4: memref<1x4x8x16xf32, #tpu.memory_space<vmem>>, %arg5: memref<1x4x8x16xf32, #tpu.memory_space<vmem>>, %arg6: memref<1x1x8x128xf32, #tpu.memory_space<vmem>>, %arg7: memref<4x16x16xf32, #tpu.memory_space<vmem>>, %arg8: memref<4x16x16xf32, #tpu.memory_space<vmem>>) attributes {dimension_semantics = [#tpu.dimension_semantics<parallel>, #tpu.dimension_semantics<parallel>], iteration_bounds = array<i64: 2, 2>, scalar_prefetch = 0 : i64, scratch_operands = 2 : i64, tpu.core_type = #tpu.core_type<tc>, window_params = [{transform_indices = @transform_0, window_bounds = array<i64: 1, 4, 8, 16>}, {transform_indices = @transform_1, window_bounds = array<i64: 1, 4, 8, 16>}, {transform_indices = @transform_2, window_bounds = array<i64: 1, 4, 8, 16>}, {transform_indices = @transform_3, window_bounds = array<i64: 1, 4, 8, 16>}, {transform_indices = @transform_4, window_bounds = array<i64: 1, 1, 8, 128>}]} {
    %c0 = arith.constant 0 : index
    %c0_0 = arith.constant 0 : index
    %c0_1 = arith.constant 0 : index
    %c0_2 = arith.constant 0 : index
    %0 = vector.load %arg2[%c0, %c0_0, %c0_1, %c0_2] : memref<1x4x8x16xf32, #tpu.memory_space<vmem>>, vector<1x4x8x16xf32>
    %1 = vector.shape_cast %0 : vector<1x4x8x16xf32> to vector<4x8x16xf32>
    %c0_3 = arith.constant 0 : index
    %c0_4 = arith.constant 0 : index
    %c0_5 = arith.constant 0 : index
    %2 = vector.load %arg7[%c0_3, %c0_4, %c0_5] : memref<4x16x16xf32, #tpu.memory_space<vmem>>, vector<4x8x16xf32>
    tpu.vector_store %arg7[%c0_3, %c0_4, %c0_5], %1 {strides = array<i32>} : memref<4x16x16xf32, #tpu.memory_space<vmem>>, vector<4x8x16xf32>,
    %c0_6 = arith.constant 0 : index
    %c0_7 = arith.constant 0 : index
    %c0_8 = arith.constant 0 : index
    %c0_9 = arith.constant 0 : index
    %3 = vector.load %arg3[%c0_6, %c0_7, %c0_8, %c0_9] : memref<1x4x8x16xf32, #tpu.memory_space<vmem>>, vector<1x4x8x16xf32>
    %4 = vector.shape_cast %3 : vector<1x4x8x16xf32> to vector<4x8x16xf32>
    %c0_10 = arith.constant 0 : index
    %c8 = arith.constant 8 : index
    %c0_11 = arith.constant 0 : index
    %5 = vector.load %arg7[%c0_10, %c8, %c0_11] : memref<4x16x16xf32, #tpu.memory_space<vmem>>, vector<4x8x16xf32>
    tpu.vector_store %arg7[%c0_10, %c8, %c0_11], %4 {strides = array<i32>} : memref<4x16x16xf32, #tpu.memory_space<vmem>>, vector<4x8x16xf32>,
    %c0_12 = arith.constant 0 : index
    %c0_13 = arith.constant 0 : index
    %c0_14 = arith.constant 0 : index
    %c0_15 = arith.constant 0 : index
    %6 = vector.load %arg4[%c0_12, %c0_13, %c0_14, %c0_15] : memref<1x4x8x16xf32, #tpu.memory_space<vmem>>, vector<1x4x8x16xf32>
    %7 = vector.shape_cast %6 : vector<1x4x8x16xf32> to vector<4x8x16xf32>
    %c0_16 = arith.constant 0 : index
    %c0_17 = arith.constant 0 : index
    %c0_18 = arith.constant 0 : index
    %8 = vector.load %arg8[%c0_16, %c0_17, %c0_18] : memref<4x16x16xf32, #tpu.memory_space<vmem>>, vector<4x8x16xf32>
    tpu.vector_store %arg8[%c0_16, %c0_17, %c0_18], %7 {strides = array<i32>} : memref<4x16x16xf32, #tpu.memory_space<vmem>>, vector<4x8x16xf32>,
    %c0_19 = arith.constant 0 : index
    %c0_20 = arith.constant 0 : index
    %c0_21 = arith.constant 0 : index
    %c0_22 = arith.constant 0 : index
    %9 = vector.load %arg5[%c0_19, %c0_20, %c0_21, %c0_22] : memref<1x4x8x16xf32, #tpu.memory_space<vmem>>, vector<1x4x8x16xf32>
    %10 = vector.shape_cast %9 : vector<1x4x8x16xf32> to vector<4x8x16xf32>
    %c0_23 = arith.constant 0 : index
    %c8_24 = arith.constant 8 : index
    %c0_25 = arith.constant 0 : index
    %11 = vector.load %arg8[%c0_23, %c8_24, %c0_25] : memref<4x16x16xf32, #tpu.memory_space<vmem>>, vector<4x8x16xf32>
    tpu.vector_store %arg8[%c0_23, %c8_24, %c0_25], %10 {strides = array<i32>} : memref<4x16x16xf32, #tpu.memory_space<vmem>>, vector<4x8x16xf32>,
    %c8_i32 = arith.constant 8 : i32
    %12 = arith.muli %arg1, %c8_i32 : i32
    %c14_i32 = arith.constant 14 : i32
    %13 = arith.subi %c14_i32, %12 : i32
    %c8_i32_26 = arith.constant 8 : i32
    %14 = arith.minsi %c8_i32_26, %13 : i32
    %c0_27 = arith.constant 0 : index
    %c0_28 = arith.constant 0 : index
    %c0_29 = arith.constant 0 : index
    %15 = vector.load %arg7[%c0_27, %c0_28, %c0_29] : memref<4x16x16xf32, #tpu.memory_space<vmem>>, vector<4x16x16xf32>
    %c0_30 = arith.constant 0 : index
    %c0_31 = arith.constant 0 : index
    %c0_32 = arith.constant 0 : index
    %16 = vector.load %arg8[%c0_30, %c0_31, %c0_32] : memref<4x16x16xf32, #tpu.memory_space<vmem>>, vector<4x16x16xf32>
    %17 = arith.mulf %15, %15 : vector<4x16x16xf32>
    %cst = arith.constant dense<0.000000e+00> : vector<16x16xf32>
    %18 = vector.multi_reduction <add>, %17, %cst [0] : vector<4x16x16xf32> to vector<16x16xf32>
    %19 = math.rsqrt %18 : vector<16x16xf32>
    %20 = arith.mulf %16, %16 : vector<4x16x16xf32>
    %cst_33 = arith.constant dense<0.000000e+00> : vector<16x16xf32>
    %21 = vector.multi_reduction <add>, %20, %cst_33 [0] : vector<4x16x16xf32> to vector<16x16xf32>
    %22 = math.rsqrt %21 : vector<16x16xf32>
    %23 = vector.extract_strided_slice %15 {offsets = [0, 1, 1], sizes = [4, 14, 14], strides = [1, 1, 1]} : vector<4x16x16xf32> to vector<4x14x14xf32>
    %24 = vector.extract_strided_slice %16 {offsets = [0, 1, 1], sizes = [4, 14, 14], strides = [1, 1, 1]} : vector<4x16x16xf32> to vector<4x14x14xf32>
    %25 = vector.extract_strided_slice %19 {offsets = [1, 1], sizes = [14, 14], strides = [1, 1]} : vector<16x16xf32> to vector<14x14xf32>
    %26 = vector.extract_strided_slice %22 {offsets = [1, 1], sizes = [14, 14], strides = [1, 1]} : vector<16x16xf32> to vector<14x14xf32>
    %cst_34 = arith.constant 0.000000e+00 : f32
    %27 = vector.broadcast %cst_34 : f32 to vector<14x14xf32>
    %28 = vector.extract_strided_slice %15 {offsets = [0, 0, 0], sizes = [4, 14, 14], strides = [1, 1, 1]} : vector<4x16x16xf32> to vector<4x14x14xf32>
    %29 = arith.mulf %23, %28 : vector<4x14x14xf32>
    %cst_35 = arith.constant dense<0.000000e+00> : vector<14x14xf32>
    %30 = vector.multi_reduction <add>, %29, %cst_35 [0] : vector<4x14x14xf32> to vector<14x14xf32>
    %31 = vector.extract_strided_slice %19 {offsets = [0, 0], sizes = [14, 14], strides = [1, 1]} : vector<16x16xf32> to vector<14x14xf32>
    %32 = arith.mulf %25, %31 : vector<14x14xf32>
    %33 = arith.mulf %30, %32 : vector<14x14xf32>
    %34 = vector.extract_strided_slice %16 {offsets = [0, 0, 0], sizes = [4, 14, 14], strides = [1, 1, 1]} : vector<4x16x16xf32> to vector<4x14x14xf32>
    %35 = arith.mulf %24, %34 : vector<4x14x14xf32>
    %cst_36 = arith.constant dense<0.000000e+00> : vector<14x14xf32>
    %36 = vector.multi_reduction <add>, %35, %cst_36 [0] : vector<4x14x14xf32> to vector<14x14xf32>
    %37 = vector.extract_strided_slice %22 {offsets = [0, 0], sizes = [14, 14], strides = [1, 1]} : vector<16x16xf32> to vector<14x14xf32>
    %38 = arith.mulf %26, %37 : vector<14x14xf32>
    %39 = arith.mulf %36, %38 : vector<14x14xf32>
    %40 = arith.subf %33, %39 : vector<14x14xf32>
    %41 = arith.mulf %40, %40 : vector<14x14xf32>
    %42 = arith.addf %27, %41 : vector<14x14xf32>
    %43 = vector.extract_strided_slice %15 {offsets = [0, 0, 1], sizes = [4, 14, 14], strides = [1, 1, 1]} : vector<4x16x16xf32> to vector<4x14x14xf32>
    %44 = arith.mulf %23, %43 : vector<4x14x14xf32>
    %cst_37 = arith.constant dense<0.000000e+00> : vector<14x14xf32>
    %45 = vector.multi_reduction <add>, %44, %cst_37 [0] : vector<4x14x14xf32> to vector<14x14xf32>
    %46 = vector.extract_strided_slice %19 {offsets = [0, 1], sizes = [14, 14], strides = [1, 1]} : vector<16x16xf32> to vector<14x14xf32>
    %47 = arith.mulf %25, %46 : vector<14x14xf32>
    %48 = arith.mulf %45, %47 : vector<14x14xf32>
    %49 = vector.extract_strided_slice %16 {offsets = [0, 0, 1], sizes = [4, 14, 14], strides = [1, 1, 1]} : vector<4x16x16xf32> to vector<4x14x14xf32>
    %50 = arith.mulf %24, %49 : vector<4x14x14xf32>
    %cst_38 = arith.constant dense<0.000000e+00> : vector<14x14xf32>
    %51 = vector.multi_reduction <add>, %50, %cst_38 [0] : vector<4x14x14xf32> to vector<14x14xf32>
    %52 = vector.extract_strided_slice %22 {offsets = [0, 1], sizes = [14, 14], strides = [1, 1]} : vector<16x16xf32> to vector<14x14xf32>
    %53 = arith.mulf %26, %52 : vector<14x14xf32>
    %54 = arith.mulf %51, %53 : vector<14x14xf32>
    %55 = arith.subf %48, %54 : vector<14x14xf32>
    %56 = arith.mulf %55, %55 : vector<14x14xf32>
    %57 = arith.addf %42, %56 : vector<14x14xf32>
    %58 = vector.extract_strided_slice %15 {offsets = [0, 0, 2], sizes = [4, 14, 14], strides = [1, 1, 1]} : vector<4x16x16xf32> to vector<4x14x14xf32>
    %59 = arith.mulf %23, %58 : vector<4x14x14xf32>
    %cst_39 = arith.constant dense<0.000000e+00> : vector<14x14xf32>
    %60 = vector.multi_reduction <add>, %59, %cst_39 [0] : vector<4x14x14xf32> to vector<14x14xf32>
    %61 = vector.extract_strided_slice %19 {offsets = [0, 2], sizes = [14, 14], strides = [1, 1]} : vector<16x16xf32> to vector<14x14xf32>
    %62 = arith.mulf %25, %61 : vector<14x14xf32>
    %63 = arith.mulf %60, %62 : vector<14x14xf32>
    %64 = vector.extract_strided_slice %16 {offsets = [0, 0, 2], sizes = [4, 14, 14], strides = [1, 1, 1]} : vector<4x16x16xf32> to vector<4x14x14xf32>
    %65 = arith.mulf %24, %64 : vector<4x14x14xf32>
    %cst_40 = arith.constant dense<0.000000e+00> : vector<14x14xf32>
    %66 = vector.multi_reduction <add>, %65, %cst_40 [0] : vector<4x14x14xf32> to vector<14x14xf32>
    %67 = vector.extract_strided_slice %22 {offsets = [0, 2], sizes = [14, 14], strides = [1, 1]} : vector<16x16xf32> to vector<14x14xf32>
    %68 = arith.mulf %26, %67 : vector<14x14xf32>
    %69 = arith.mulf %66, %68 : vector<14x14xf32>
    %70 = arith.subf %63, %69 : vector<14x14xf32>
    %71 = arith.mulf %70, %70 : vector<14x14xf32>
    %72 = arith.addf %57, %71 : vector<14x14xf32>
    %73 = vector.extract_strided_slice %15 {offsets = [0, 1, 0], sizes = [4, 14, 14], strides = [1, 1, 1]} : vector<4x16x16xf32> to vector<4x14x14xf32>
    %74 = arith.mulf %23, %73 : vector<4x14x14xf32>
    %cst_41 = arith.constant dense<0.000000e+00> : vector<14x14xf32>
    %75 = vector.multi_reduction <add>, %74, %cst_41 [0] : vector<4x14x14xf32> to vector<14x14xf32>
    %76 = vector.extract_strided_slice %19 {offsets = [1, 0], sizes = [14, 14], strides = [1, 1]} : vector<16x16xf32> to vector<14x14xf32>
    %77 = arith.mulf %25, %76 : vector<14x14xf32>
    %78 = arith.mulf %75, %77 : vector<14x14xf32>
    %79 = vector.extract_strided_slice %16 {offsets = [0, 1, 0], sizes = [4, 14, 14], strides = [1, 1, 1]} : vector<4x16x16xf32> to vector<4x14x14xf32>
    %80 = arith.mulf %24, %79 : vector<4x14x14xf32>
    %cst_42 = arith.constant dense<0.000000e+00> : vector<14x14xf32>
    %81 = vector.multi_reduction <add>, %80, %cst_42 [0] : vector<4x14x14xf32> to vector<14x14xf32>
    %82 = vector.extract_strided_slice %22 {offsets = [1, 0], sizes = [14, 14], strides = [1, 1]} : vector<16x16xf32> to vector<14x14xf32>
    %83 = arith.mulf %26, %82 : vector<14x14xf32>
    %84 = arith.mulf %81, %83 : vector<14x14xf32>
    %85 = arith.subf %78, %84 : vector<14x14xf32>
    %86 = arith.mulf %85, %85 : vector<14x14xf32>
    %87 = arith.addf %72, %86 : vector<14x14xf32>
    %88 = vector.extract_strided_slice %15 {offsets = [0, 1, 2], sizes = [4, 14, 14], strides = [1, 1, 1]} : vector<4x16x16xf32> to vector<4x14x14xf32>
    %89 = arith.mulf %23, %88 : vector<4x14x14xf32>
    %cst_43 = arith.constant dense<0.000000e+00> : vector<14x14xf32>
    %90 = vector.multi_reduction <add>, %89, %cst_43 [0] : vector<4x14x14xf32> to vector<14x14xf32>
    %91 = vector.extract_strided_slice %19 {offsets = [1, 2], sizes = [14, 14], strides = [1, 1]} : vector<16x16xf32> to vector<14x14xf32>
    %92 = arith.mulf %25, %91 : vector<14x14xf32>
    %93 = arith.mulf %90, %92 : vector<14x14xf32>
    %94 = vector.extract_strided_slice %16 {offsets = [0, 1, 2], sizes = [4, 14, 14], strides = [1, 1, 1]} : vector<4x16x16xf32> to vector<4x14x14xf32>
    %95 = arith.mulf %24, %94 : vector<4x14x14xf32>
    %cst_44 = arith.constant dense<0.000000e+00> : vector<14x14xf32>
    %96 = vector.multi_reduction <add>, %95, %cst_44 [0] : vector<4x14x14xf32> to vector<14x14xf32>
    %97 = vector.extract_strided_slice %22 {offsets = [1, 2], sizes = [14, 14], strides = [1, 1]} : vector<16x16xf32> to vector<14x14xf32>
    %98 = arith.mulf %26, %97 : vector<14x14xf32>
    %99 = arith.mulf %96, %98 : vector<14x14xf32>
    %100 = arith.subf %93, %99 : vector<14x14xf32>
    %101 = arith.mulf %100, %100 : vector<14x14xf32>
    %102 = arith.addf %87, %101 : vector<14x14xf32>
    %103 = vector.extract_strided_slice %15 {offsets = [0, 2, 0], sizes = [4, 14, 14], strides = [1, 1, 1]} : vector<4x16x16xf32> to vector<4x14x14xf32>
    %104 = arith.mulf %23, %103 : vector<4x14x14xf32>
    %cst_45 = arith.constant dense<0.000000e+00> : vector<14x14xf32>
    %105 = vector.multi_reduction <add>, %104, %cst_45 [0] : vector<4x14x14xf32> to vector<14x14xf32>
    %106 = vector.extract_strided_slice %19 {offsets = [2, 0], sizes = [14, 14], strides = [1, 1]} : vector<16x16xf32> to vector<14x14xf32>
    %107 = arith.mulf %25, %106 : vector<14x14xf32>
    %108 = arith.mulf %105, %107 : vector<14x14xf32>
    %109 = vector.extract_strided_slice %16 {offsets = [0, 2, 0], sizes = [4, 14, 14], strides = [1, 1, 1]} : vector<4x16x16xf32> to vector<4x14x14xf32>
    %110 = arith.mulf %24, %109 : vector<4x14x14xf32>
    %cst_46 = arith.constant dense<0.000000e+00> : vector<14x14xf32>
    %111 = vector.multi_reduction <add>, %110, %cst_46 [0] : vector<4x14x14xf32> to vector<14x14xf32>
    %112 = vector.extract_strided_slice %22 {offsets = [2, 0], sizes = [14, 14], strides = [1, 1]} : vector<16x16xf32> to vector<14x14xf32>
    %113 = arith.mulf %26, %112 : vector<14x14xf32>
    %114 = arith.mulf %111, %113 : vector<14x14xf32>
    %115 = arith.subf %108, %114 : vector<14x14xf32>
    %116 = arith.mulf %115, %115 : vector<14x14xf32>
    %117 = arith.addf %102, %116 : vector<14x14xf32>
    %118 = vector.extract_strided_slice %15 {offsets = [0, 2, 1], sizes = [4, 14, 14], strides = [1, 1, 1]} : vector<4x16x16xf32> to vector<4x14x14xf32>
    %119 = arith.mulf %23, %118 : vector<4x14x14xf32>
    %cst_47 = arith.constant dense<0.000000e+00> : vector<14x14xf32>
    %120 = vector.multi_reduction <add>, %119, %cst_47 [0] : vector<4x14x14xf32> to vector<14x14xf32>
    %121 = vector.extract_strided_slice %19 {offsets = [2, 1], sizes = [14, 14], strides = [1, 1]} : vector<16x16xf32> to vector<14x14xf32>
    %122 = arith.mulf %25, %121 : vector<14x14xf32>
    %123 = arith.mulf %120, %122 : vector<14x14xf32>
    %124 = vector.extract_strided_slice %16 {offsets = [0, 2, 1], sizes = [4, 14, 14], strides = [1, 1, 1]} : vector<4x16x16xf32> to vector<4x14x14xf32>
    %125 = arith.mulf %24, %124 : vector<4x14x14xf32>
    %cst_48 = arith.constant dense<0.000000e+00> : vector<14x14xf32>
    %126 = vector.multi_reduction <add>, %125, %cst_48 [0] : vector<4x14x14xf32> to vector<14x14xf32>
    %127 = vector.extract_strided_slice %22 {offsets = [2, 1], sizes = [14, 14], strides = [1, 1]} : vector<16x16xf32> to vector<14x14xf32>
    %128 = arith.mulf %26, %127 : vector<14x14xf32>
    %129 = arith.mulf %126, %128 : vector<14x14xf32>
    %130 = arith.subf %123, %129 : vector<14x14xf32>
    %131 = arith.mulf %130, %130 : vector<14x14xf32>
    %132 = arith.addf %117, %131 : vector<14x14xf32>
    %133 = vector.extract_strided_slice %15 {offsets = [0, 2, 2], sizes = [4, 14, 14], strides = [1, 1, 1]} : vector<4x16x16xf32> to vector<4x14x14xf32>
    %134 = arith.mulf %23, %133 : vector<4x14x14xf32>
    %cst_49 = arith.constant dense<0.000000e+00> : vector<14x14xf32>
    %135 = vector.multi_reduction <add>, %134, %cst_49 [0] : vector<4x14x14xf32> to vector<14x14xf32>
    %136 = vector.extract_strided_slice %19 {offsets = [2, 2], sizes = [14, 14], strides = [1, 1]} : vector<16x16xf32> to vector<14x14xf32>
    %137 = arith.mulf %25, %136 : vector<14x14xf32>
    %138 = arith.mulf %135, %137 : vector<14x14xf32>
    %139 = vector.extract_strided_slice %16 {offsets = [0, 2, 2], sizes = [4, 14, 14], strides = [1, 1, 1]} : vector<4x16x16xf32> to vector<4x14x14xf32>
    %140 = arith.mulf %24, %139 : vector<4x14x14xf32>
    %cst_50 = arith.constant dense<0.000000e+00> : vector<14x14xf32>
    %141 = vector.multi_reduction <add>, %140, %cst_50 [0] : vector<4x14x14xf32> to vector<14x14xf32>
    %142 = vector.extract_strided_slice %22 {offsets = [2, 2], sizes = [14, 14], strides = [1, 1]} : vector<16x16xf32> to vector<14x14xf32>
    %143 = arith.mulf %26, %142 : vector<14x14xf32>
    %144 = arith.mulf %141, %143 : vector<14x14xf32>
    %145 = arith.subf %138, %144 : vector<14x14xf32>
    %146 = arith.mulf %145, %145 : vector<14x14xf32>
    %147 = arith.addf %132, %146 : vector<14x14xf32>
    %148 = tpu.iota {dimensions = array<i32: 0>} : vector<14x14xi32>
    %149 = vector.broadcast %14 : i32 to vector<14x14xi32>
    %150 = arith.cmpi slt, %148, %149 : vector<14x14xi32>
    %cst_51 = arith.constant 0.000000e+00 : f32
    %151 = vector.broadcast %cst_51 : f32 to vector<14x14xf32>
    %152 = arith.select %150, %147, %151 : vector<14x14xi1>, vector<14x14xf32>
    %153 = vector.shape_cast %152 : vector<14x14xf32> to vector<1x14x14xf32>
    %cst_52 = arith.constant dense<0.000000e+00> : vector<1xf32>
    %154 = vector.multi_reduction <add>, %153, %cst_52 [1, 2] : vector<1x14x14xf32> to vector<1xf32>
    %155 = vector.shape_cast %154 : vector<1xf32> to vector<1x1x1xf32>
    %156 = vector.extract %155[0, 0, 0] : f32 from vector<1x1x1xf32>
    %157 = vector.broadcast %156 : f32 to vector<1x1x8x128xf32>
    %c0_53 = arith.constant 0 : index
    %c0_54 = arith.constant 0 : index
    %c0_55 = arith.constant 0 : index
    %c0_56 = arith.constant 0 : index
    %158 = vector.load %arg6[%c0_53, %c0_54, %c0_55, %c0_56] : memref<1x1x8x128xf32, #tpu.memory_space<vmem>>, vector<1x1x8x128xf32>
    tpu.vector_store %arg6[%c0_53, %c0_54, %c0_55, %c0_56], %157 {strides = array<i32>} : memref<1x1x8x128xf32, #tpu.memory_space<vmem>>, vector<1x1x8x128xf32>,
    return
  }
  func.func @transform_0(%arg0: i32, %arg1: i32) -> (i32, i32, i32, i32) {
    %c0_i32 = arith.constant 0 : i32
    %c0_i32_0 = arith.constant 0 : i32
    %c0_i32_1 = arith.constant 0 : i32
    return %arg0, %c0_i32, %arg1, %c0_i32_0 : i32, i32, i32, i32
  }
  func.func @transform_1(%arg0: i32, %arg1: i32) -> (i32, i32, i32, i32) {
    %c1_i32 = arith.constant 1 : i32
    %0 = arith.addi %arg1, %c1_i32 : i32
    %c1_i32_0 = arith.constant 1 : i32
    %1 = arith.muli %0, %c1_i32_0 : i32
    %c1_i32_1 = arith.constant 1 : i32
    %2 = arith.minsi %1, %c1_i32_1 : i32
    %c0_i32 = arith.constant 0 : i32
    %c0_i32_2 = arith.constant 0 : i32
    %c0_i32_3 = arith.constant 0 : i32
    return %arg0, %c0_i32, %2, %c0_i32_2 : i32, i32, i32, i32
  }
  func.func @transform_2(%arg0: i32, %arg1: i32) -> (i32, i32, i32, i32) {
    %c0_i32 = arith.constant 0 : i32
    %c0_i32_0 = arith.constant 0 : i32
    %c0_i32_1 = arith.constant 0 : i32
    return %arg0, %c0_i32, %arg1, %c0_i32_0 : i32, i32, i32, i32
  }
  func.func @transform_3(%arg0: i32, %arg1: i32) -> (i32, i32, i32, i32) {
    %c1_i32 = arith.constant 1 : i32
    %0 = arith.addi %arg1, %c1_i32 : i32
    %c1_i32_0 = arith.constant 1 : i32
    %1 = arith.muli %0, %c1_i32_0 : i32
    %c1_i32_1 = arith.constant 1 : i32
    %2 = arith.minsi %1, %c1_i32_1 : i32
    %c0_i32 = arith.constant 0 : i32
    %c0_i32_2 = arith.constant 0 : i32
    %c0_i32_3 = arith.constant 0 : i32
    return %arg0, %c0_i32, %2, %c0_i32_2 : i32, i32, i32, i32
  }
  func.func @transform_4(%arg0: i32, %arg1: i32) -> (i32, i32, i32, i32) {
    %c0_i32 = arith.constant 0 : i32
    %c0_i32_0 = arith.constant 0 : i32
    %c0_i32_1 = arith.constant 0 : i32
    return %arg0, %arg1, %c0_i32, %c0_i32_0 : i32, i32, i32, i32
  }
}

</mosaic_0001>

<llo_original>
// kernel: tpu_custom_call.1
$region0: #{tpu_custom_call.1}
  #allocation0 [shape = 'u32[]', space=smem, size = 0x4, offset = 0x4, fixed_abs, tag = 'smem constant byte address 0x4 - core index']
  #allocation1 [shape = 'u32[144,128]{1,0:T(1,128)}', space=vmem, size = 0x12000, scoped, tag = 'internal scratch']
  #allocation2 [shape = 'f32[4,16,16]{2,1,0:T(8,128)}', space=vmem, size = 0x8000, scoped, tag = 'scratch operand']
  #allocation3 [shape = 'f32[4,16,16]{2,1,0:T(8,128)}', space=vmem, size = 0x8000, scoped, tag = 'scratch operand']
  %s0 = inlined_call_operand.hbm [shape: f32[2,4,16,16], index: 0, kind: input, shape index: {}]
  %s1 = inlined_call_operand.hbm [shape: f32[2,4,16,16], index: 1, kind: input, shape index: {}]
  %s2 = inlined_call_operand.hbm [shape: f32[2,4,16,16], index: 2, kind: input, shape index: {}]
  %s3 = inlined_call_operand.hbm [shape: f32[2,4,16,16], index: 3, kind: input, shape index: {}]
  %s4 = inlined_call_operand.hbm [shape: f32[2,2,8,128], index: 4, kind: output, shape index: {}]
  %s5 = sld [smem:[#allocation0]]
  $region65: #{tpu_custom_call.1} parent=0
    _
  %s7 = ssub.s32 1, %s5
  %s8 = scalar_select 0, %s7, %s5
  $region1: #{tpu_custom_call.1} parent=0
    #allocation4 [shape = 'u8[32768]{0}', space=vmem, size = 0x8000, scoped, tag = 'input window, operand 0']
    #allocation5 [shape = 's32[2]{0}', space=sflag, size = 0x8, scoped, tag = 'scoped memory for tpu_custom_call.1']
    #allocation6 [shape = 's32[2]{0}', space=sflag, size = 0x8, scoped, tag = 'scoped memory for tpu_custom_call.1']
    #allocation7 [shape = 'u8[32768]{0}', space=vmem, size = 0x8000, scoped, tag = 'input window, operand 1']
    #allocation8 [shape = 's32[2]{0}', space=sflag, size = 0x8, scoped, tag = 'scoped memory for tpu_custom_call.1']
    #allocation9 [shape = 'u8[32768]{0}', space=vmem, size = 0x8000, scoped, tag = 'input window, operand 2']
    #allocation10 [shape = 'u8[32768]{0}', space=vmem, size = 0x8000, scoped, tag = 'input window, operand 3']
    #allocation11 [shape = 's32[2]{0}', space=sflag, size = 0x8, scoped, tag = 'scoped memory for tpu_custom_call.1']
    #allocation12 [shape = 'u8[8192]{0}', space=vmem, size = 0x2000, scoped, tag = 'output window, operand 0']
    %9 = vsyncpa [#allocation5], 0
    %s10 = scalar_lea.sflag [#allocation5], 1
    %11 = vsyncpa %s10, 0
    %12 = vsyncpa [#allocation8], 0
    %s13 = scalar_lea.sflag [#allocation8], 1
    %14 = vsyncpa %s13, 0
    %15 = vsyncpa [#allocation11], 0
    %s16 = scalar_lea.sflag [#allocation11], 1
    %17 = vsyncpa %s16, 0
    %18 = vsyncpa [#allocation6], 0
    %s19 = scalar_lea.sflag [#allocation6], 1
    %20 = vsyncpa %s19, 0
    loop: start=0, step=1, limit=6
    $region2: #{tpu_custom_call.1} parent=1 // loop_pre_header
      _
    $region3: #{tpu_custom_call.1} parent=1 // loop_header
      %s22 = sphi 0, %s26
      %p23 = scmp.ge.s32.totalorder %s22, 6
      %s29 = sphi 0, %s41
      %s30 = sphi 0, %s37
      %s31 = sphi 0, %s29
      %s32 = sphi 0, %s30
      %s33 = sphi 0, %s31
      %s34 = sphi 0, %s32
      %s46 = sphi 0, %s48
      %s49 = sphi 0, %s46
      %s50 = sphi 0, %s49
      %s66 = sphi 0, %s50
      %s80 = sphi 0, %s82
      %s83 = sphi 0, %s80
      %s84 = sphi 0, %s83
      %s100 = sphi 0, %s84
      %s108 = sphi 0, %s110
      %s111 = sphi 0, %s108
      %s112 = sphi 0, %s111
      %s128 = sphi 0, %s112
      %s142 = sphi 0, %s144
      %s145 = sphi 0, %s142
      %s146 = sphi 0, %s145
      %s162 = sphi 0, %s146
      %s170 = sphi 0, %s172
      %s173 = sphi 0, %s170
      %s174 = sphi 0, %s173
      %s190 = sphi 0, %s174
    $region4: #{tpu_custom_call.1} parent=1 // loop_header_branch
      %25 = sbr.rel (%p23) target = $region8
    $region5: #{tpu_custom_call.1} parent=1 // loop_body
      %s27 = ssub.s32 %s22, 1
      %s28 = ssub.s32 %s22, 2
      %s35 = sadd.s32 1, %s30
      %p36 = scmp.ge.s32.totalorder %s35, 2
      %s37 = scalar_select %p36, 0, %s35
      %s38 = sadd.s32 1, %s29
      %s39 = scalar_select %p36, %s38, %s29
      %p40 = scmp.ge.s32.totalorder %s39, 2
      %s41 = scalar_select %p40, 0, %s39
      %s42 = ssub.s32 %s29, %s41
      %s43 = ssub.s32 %s30, %s37
      %s44 = sor.u32 %s42, %s43
      %p45 = scmp.eq.s32.totalorder %s44, 0
      %s47 = sadd.s32 %s46, 1
      %s48 = scalar_select %p45, %s46, %s47
      %p51 = pneg %p45
      %p52 = scmp.eq.s32.totalorder %s22, 3
      %p53 = por %p51, %p52
      %p54 = scmp.ne.s32.totalorder %s46, %s49
      %p55 = scmp.eq.s32.totalorder %s22, 0
      %p56 = por %p54, %p55
      %p57 = scmp.ne.s32.totalorder %s46, %s49
      %p58 = scmp.eq.s32.totalorder %s27, 3
      %p59 = por %p57, %p58
      %p60 = scmp.ne.s32.totalorder %s49, %s50
      %p61 = scmp.eq.s32.totalorder %s27, 0
      %p62 = por %p60, %p61
      %p63 = scmp.ne.s32.totalorder %s49, %s50
      %p64 = scmp.eq.s32.totalorder %s28, 3
      %p65 = por %p63, %p64
      %p67 = scmp.ne.s32.totalorder %s50, %s66
      %p68 = scmp.eq.s32.totalorder %s28, 0
      %p69 = por %p67, %p68
      %s70 = sadd.s32 %s30, 1
      %p71 = scmp.lt.s32.totalorder %s70, 1
      %s72 = scalar_select %p71, %s70, 1
      %s73 = sadd.s32 %s37, 1
      %p74 = scmp.lt.s32.totalorder %s73, 1
      %s75 = scalar_select %p74, %s73, 1
      %s76 = ssub.s32 %s29, %s41
      %s77 = ssub.s32 %s72, %s75
      %s78 = sor.u32 %s76, %s77
      %p79 = scmp.eq.s32.totalorder %s78, 0
      %s81 = sadd.s32 %s80, 1
      %s82 = scalar_select %p79, %s80, %s81
      %p85 = pneg %p79
      %p86 = scmp.eq.s32.totalorder %s22, 3
      %p87 = por %p85, %p86
      %p88 = scmp.ne.s32.totalorder %s80, %s83
      %p89 = scmp.eq.s32.totalorder %s22, 0
      %p90 = por %p88, %p89
      %p91 = scmp.ne.s32.totalorder %s80, %s83
      %p92 = scmp.eq.s32.totalorder %s27, 3
      %p93 = por %p91, %p92
      %p94 = scmp.ne.s32.totalorder %s83, %s84
      %p95 = scmp.eq.s32.totalorder %s27, 0
      %p96 = por %p94, %p95
      %p97 = scmp.ne.s32.totalorder %s83, %s84
      %p98 = scmp.eq.s32.totalorder %s28, 3
      %p99 = por %p97, %p98
      %p101 = scmp.ne.s32.totalorder %s84, %s100
      %p102 = scmp.eq.s32.totalorder %s28, 0
      %p103 = por %p101, %p102
      %s104 = ssub.s32 %s29, %s41
      %s105 = ssub.s32 %s30, %s37
      %s106 = sor.u32 %s104, %s105
      %p107 = scmp.eq.s32.totalorder %s106, 0
      %s109 = sadd.s32 %s108, 1
      %s110 = scalar_select %p107, %s108, %s109
      %p113 = pneg %p107
      %p114 = scmp.eq.s32.totalorder %s22, 3
      %p115 = por %p113, %p114
      %p116 = scmp.ne.s32.totalorder %s108, %s111
      %p117 = scmp.eq.s32.totalorder %s22, 0
      %p118 = por %p116, %p117
      %p119 = scmp.ne.s32.totalorder %s108, %s111
      %p120 = scmp.eq.s32.totalorder %s27, 3
      %p121 = por %p119, %p120
      %p122 = scmp.ne.s32.totalorder %s111, %s112
      %p123 = scmp.eq.s32.totalorder %s27, 0
      %p124 = por %p122, %p123
      %p125 = scmp.ne.s32.totalorder %s111, %s112
      %p126 = scmp.eq.s32.totalorder %s28, 3
      %p127 = por %p125, %p126
      %p129 = scmp.ne.s32.totalorder %s112, %s128
      %p130 = scmp.eq.s32.totalorder %s28, 0
      %p131 = por %p129, %p130
      %s132 = sadd.s32 %s30, 1
      %p133 = scmp.lt.s32.totalorder %s132, 1
      %s134 = scalar_select %p133, %s132, 1
      %s135 = sadd.s32 %s37, 1
      %p136 = scmp.lt.s32.totalorder %s135, 1
      %s137 = scalar_select %p136, %s135, 1
      %s138 = ssub.s32 %s29, %s41
      %s139 = ssub.s32 %s134, %s137
      %s140 = sor.u32 %s138, %s139
      %p141 = scmp.eq.s32.totalorder %s140, 0
      %s143 = sadd.s32 %s142, 1
      %s144 = scalar_select %p141, %s142, %s143
      %p147 = pneg %p141
      %p148 = scmp.eq.s32.totalorder %s22, 3
      %p149 = por %p147, %p148
      %p150 = scmp.ne.s32.totalorder %s142, %s145
      %p151 = scmp.eq.s32.totalorder %s22, 0
      %p152 = por %p150, %p151
      %p153 = scmp.ne.s32.totalorder %s142, %s145
      %p154 = scmp.eq.s32.totalorder %s27, 3
      %p155 = por %p153, %p154
      %p156 = scmp.ne.s32.totalorder %s145, %s146
      %p157 = scmp.eq.s32.totalorder %s27, 0
      %p158 = por %p156, %p157
      %p159 = scmp.ne.s32.totalorder %s145, %s146
      %p160 = scmp.eq.s32.totalorder %s28, 3
      %p161 = por %p159, %p160
      %p163 = scmp.ne.s32.totalorder %s146, %s162
      %p164 = scmp.eq.s32.totalorder %s28, 0
      %p165 = por %p163, %p164
      %s166 = ssub.s32 %s29, %s41
      %s167 = ssub.s32 %s30, %s37
      %s168 = sor.u32 %s166, %s167
      %p169 = scmp.eq.s32.totalorder %s168, 0
      %s171 = sadd.s32 %s170, 1
      %s172 = scalar_select %p169, %s170, %s171
      %p175 = pneg %p169
      %p176 = scmp.eq.s32.totalorder %s22, 3
      %p177 = por %p175, %p176
      %p178 = scmp.ne.s32.totalorder %s170, %s173
      %p179 = scmp.eq.s32.totalorder %s22, 0
      %p180 = por %p178, %p179
      %p181 = scmp.ne.s32.totalorder %s170, %s173
      %p182 = scmp.eq.s32.totalorder %s27, 3
      %p183 = por %p181, %p182
      %p184 = scmp.ne.s32.totalorder %s173, %s174
      %p185 = scmp.eq.s32.totalorder %s27, 0
      %p186 = por %p184, %p185
      %p187 = scmp.ne.s32.totalorder %s173, %s174
      %p188 = scmp.eq.s32.totalorder %s28, 3
      %p189 = por %p187, %p188
      %p191 = scmp.ne.s32.totalorder %s174, %s190
      %p192 = scmp.eq.s32.totalorder %s28, 0
      %p193 = por %p191, %p192
      %p194 = scmp.le.s32.totalorder 1, %s22
      %p195 = scmp.lt.s32.totalorder %s22, 5
      %p196 = pnand %p194, %p195
      %p197 = pneg %p196
      // Predicated region
      $region9: #{tpu_custom_call.1} parent=5 // pred_check
        _
      $region10: #{tpu_custom_call.1} parent=5 // pred_check_branch
        %199 = sbr.rel (%p196) target = $region12
      $region11: #{tpu_custom_call.1} parent=5 // pred_region
        %s200 = ssub.s32 %s22, 1
      $region12: #{tpu_custom_call.1} parent=5 // pred_fallthru
        _
      %p201 = scmp.lt.s32.totalorder %s22, 4
      // Predicated region
      $region13: #{tpu_custom_call.1} parent=5 // pred_check
        %p202 = pneg %p201
      $region14: #{tpu_custom_call.1} parent=5 // pred_check_branch
        %204 = sbr.rel (%p202) target = $region16
      $region15: #{tpu_custom_call.1} parent=5 // pred_region
        // Predicated region
        $region17: #{tpu_custom_call.1} parent=15 // pred_check
          %p205 = pneg %p56
        $region18: #{tpu_custom_call.1} parent=15 // pred_check_branch
          %207 = sbr.rel (%p205) target = $region20
        $region19: #{tpu_custom_call.1} parent=15 // pred_region
          %s208 = sand.u32 %s46, 1
          %s209 = scalar_lea.sflag [#allocation5], %s208
          %s210 = sand.u32 %s46, 1
          %s211 = smul.addr %s210, 32
          %s212 = scalar_lea.vmem [#allocation4], %s211
          %s214 = ssub.s32 512, 512
          %215 = vsyncadd %s209, %s214
          %s216 = smul.addr %s29, 8
          %s217 = sadd.s32 %s30, %s216
          %s218 = smul.addr %s217, 128
          %s219 = scalar_lea.hbm %s0, %s218
          %s220 = sshll.u32 %s212, 4
          %s221 = int_to_ptr.vmem [resolvable:$true] %s220
          %226 = dma.hbm_to_vmem [thread:$0]  %s219, 512, %s221, %s209, 256, 128, 8
        $region20: #{tpu_custom_call.1} parent=15 // pred_fallthru
          _
        // Predicated region
        $region21: #{tpu_custom_call.1} parent=15 // pred_check
          %p227 = pneg %p90
        $region22: #{tpu_custom_call.1} parent=15 // pred_check_branch
          %229 = sbr.rel (%p227) target = $region24
        $region23: #{tpu_custom_call.1} parent=15 // pred_region
          %s230 = sand.u32 %s22, 1
          %s231 = scalar_lea.sflag [#allocation8], %s230
          %s232 = sand.u32 %s80, 1
          %s233 = smul.addr %s232, 32
          %s234 = scalar_lea.vmem [#allocation7], %s233
          %s235 = sadd.s32 %s30, 1
          %p236 = scmp.lt.s32.totalorder %s235, 1
          %s237 = scalar_select %p236, %s235, 1
          %s239 = ssub.s32 512, 512
          %240 = vsyncadd %s231, %s239
          %s241 = smul.addr %s29, 8
          %s242 = sadd.s32 %s237, %s241
          %s243 = smul.addr %s242, 128
          %s244 = scalar_lea.hbm %s1, %s243
          %s245 = sshll.u32 %s234, 4
          %s246 = int_to_ptr.vmem [resolvable:$true] %s245
          %251 = dma.hbm_to_vmem [thread:$0]  %s244, 512, %s246, %s231, 256, 128, 8
        $region24: #{tpu_custom_call.1} parent=15 // pred_fallthru
          _
        // Predicated region
        $region25: #{tpu_custom_call.1} parent=15 // pred_check
          %p252 = pneg %p118
        $region26: #{tpu_custom_call.1} parent=15 // pred_check_branch
          %254 = sbr.rel (%p252) target = $region28
        $region27: #{tpu_custom_call.1} parent=15 // pred_region
          %s255 = sand.u32 %s22, 1
          %s256 = scalar_lea.sflag [#allocation8], %s255
          %s257 = sand.u32 %s108, 1
          %s258 = smul.addr %s257, 32
          %s259 = scalar_lea.vmem [#allocation9], %s258
          %s261 = ssub.s32 512, 512
          %262 = vsyncadd %s256, %s261
          %s263 = smul.addr %s29, 8
          %s264 = sadd.s32 %s30, %s263
          %s265 = smul.addr %s264, 128
          %s266 = scalar_lea.hbm %s2, %s265
          %s267 = sshll.u32 %s259, 4
          %s268 = int_to_ptr.vmem [resolvable:$true] %s267
          %273 = dma.hbm_to_vmem [thread:$0]  %s266, 512, %s268, %s256, 256, 128, 8
        $region28: #{tpu_custom_call.1} parent=15 // pred_fallthru
          _
        // Predicated region
        $region29: #{tpu_custom_call.1} parent=15 // pred_check
          %p274 = pneg %p152
        $region30: #{tpu_custom_call.1} parent=15 // pred_check_branch
          %276 = sbr.rel (%p274) target = $region32
        $region31: #{tpu_custom_call.1} parent=15 // pred_region
          %s277 = sand.u32 %s142, 1
          %s278 = scalar_lea.sflag [#allocation11], %s277
          %s279 = sand.u32 %s142, 1
          %s280 = smul.addr %s279, 32
          %s281 = scalar_lea.vmem [#allocation10], %s280
          %s282 = sadd.s32 %s30, 1
          %p283 = scmp.lt.s32.totalorder %s282, 1
          %s284 = scalar_select %p283, %s282, 1
          %s286 = ssub.s32 512, 512
          %287 = vsyncadd %s278, %s286
          %s288 = smul.addr %s29, 8
          %s289 = sadd.s32 %s284, %s288
          %s290 = smul.addr %s289, 128
          %s291 = scalar_lea.hbm %s3, %s290
          %s292 = sshll.u32 %s281, 4
          %s293 = int_to_ptr.vmem [resolvable:$true] %s292
          %298 = dma.hbm_to_vmem [thread:$0]  %s291, 512, %s293, %s278, 256, 128, 8
        $region32: #{tpu_custom_call.1} parent=15 // pred_fallthru
          _
      $region16: #{tpu_custom_call.1} parent=5 // pred_fallthru
        _
      %p299 = scmp.le.s32.totalorder 1, %s22
      %p300 = scmp.lt.s32.totalorder %s22, 5
      %p301 = pnand %p299, %p300
      %p302 = pneg %p301
      // Predicated region
      $region33: #{tpu_custom_call.1} parent=5 // pred_check
        _
      $region34: #{tpu_custom_call.1} parent=5 // pred_check_branch
        %304 = sbr.rel (%p301) target = $region36
      $region35: #{tpu_custom_call.1} parent=5 // pred_region
        %s305 = ssub.s32 %s22, 1
        %s306 = sand.u32 %s49, 1
        %s307 = scalar_lea.sflag [#allocation5], %s306
        %s308 = sand.u32 %s49, 1
        %s309 = smul.addr %s308, 32
        %s310 = scalar_lea.vmem [#allocation4], %s309
        // Predicated region
        $region37: #{tpu_custom_call.1} parent=35 // pred_check
          %p311 = pneg %p62
        $region38: #{tpu_custom_call.1} parent=35 // pred_check_branch
          %313 = sbr.rel (%p311) target = $region40
        $region39: #{tpu_custom_call.1} parent=35 // pred_region
          %314 = dma.done %s307, 512
        $region40: #{tpu_custom_call.1} parent=35 // pred_fallthru
          _
        %s315 = sand.u32 %s27, 1
        %s316 = scalar_lea.sflag [#allocation8], %s315
        %s317 = sand.u32 %s83, 1
        %s318 = smul.addr %s317, 32
        %s319 = scalar_lea.vmem [#allocation7], %s318
        // Predicated region
        $region41: #{tpu_custom_call.1} parent=35 // pred_check
          %p320 = pneg %p96
        $region42: #{tpu_custom_call.1} parent=35 // pred_check_branch
          %322 = sbr.rel (%p320) target = $region44
        $region43: #{tpu_custom_call.1} parent=35 // pred_region
          %323 = dma.done %s316, 512
        $region44: #{tpu_custom_call.1} parent=35 // pred_fallthru
          _
        %s324 = sand.u32 %s27, 1
        %s325 = scalar_lea.sflag [#allocation8], %s324
        %s326 = sand.u32 %s111, 1
        %s327 = smul.addr %s326, 32
        %s328 = scalar_lea.vmem [#allocation9], %s327
        // Predicated region
        $region45: #{tpu_custom_call.1} parent=35 // pred_check
          %p329 = pneg %p124
        $region46: #{tpu_custom_call.1} parent=35 // pred_check_branch
          %331 = sbr.rel (%p329) target = $region48
        $region47: #{tpu_custom_call.1} parent=35 // pred_region
          %332 = dma.done %s325, 512
        $region48: #{tpu_custom_call.1} parent=35 // pred_fallthru
          _
        %s333 = sand.u32 %s145, 1
        %s334 = scalar_lea.sflag [#allocation11], %s333
        %s335 = sand.u32 %s145, 1
        %s336 = smul.addr %s335, 32
        %s337 = scalar_lea.vmem [#allocation10], %s336
        // Predicated region
        $region49: #{tpu_custom_call.1} parent=35 // pred_check
          %p338 = pneg %p158
        $region50: #{tpu_custom_call.1} parent=35 // pred_check_branch
          %340 = sbr.rel (%p338) target = $region52
        $region51: #{tpu_custom_call.1} parent=35 // pred_region
          %341 = dma.done %s334, 512
        $region52: #{tpu_custom_call.1} parent=35 // pred_fallthru
          _
        %s342 = sand.u32 %s49, 1
        %s343 = scalar_lea.sflag [#allocation5], %s342
        %s344 = sand.u32 %s49, 1
        %s345 = smul.addr %s344, 32
        %s346 = scalar_lea.vmem [#allocation4], %s345
        %p347 = pneg %p62
        %p348 = pneg %p59
        %s349 = sand.u32 %s27, 1
        %s350 = scalar_lea.sflag [#allocation8], %s349
        %s351 = sand.u32 %s83, 1
        %s352 = smul.addr %s351, 32
        %s353 = scalar_lea.vmem [#allocation7], %s352
        %p354 = pneg %p96
        %p355 = pneg %p93
        %s356 = sand.u32 %s27, 1
        %s357 = scalar_lea.sflag [#allocation8], %s356
        %s358 = sand.u32 %s111, 1
        %s359 = smul.addr %s358, 32
        %s360 = scalar_lea.vmem [#allocation9], %s359
        %p361 = pneg %p124
        %p362 = pneg %p121
        %s363 = sand.u32 %s145, 1
        %s364 = scalar_lea.sflag [#allocation11], %s363
        %s365 = sand.u32 %s145, 1
        %s366 = smul.addr %s365, 32
        %s367 = scalar_lea.vmem [#allocation10], %s366
        %p368 = pneg %p158
        %p369 = pneg %p155
        %p370 = pneg %p186
        %p371 = pneg %p183
        %s372 = sand.u32 %s173, 1
        %s373 = scalar_lea.sflag [#allocation6], %s372
        %s374 = sand.u32 %s173, 1
        %s375 = smul.addr %s374, 8
        %s376 = scalar_lea.vmem [#allocation12], %s375
        %s377 = sadd.s32 %s32, 1
        %p378 = scmp.lt.s32.totalorder %s377, 1
        %s379 = scalar_select %p378, %s377, 1
        %s380 = sadd.s32 %s32, 1
        %p381 = scmp.lt.s32.totalorder %s380, 1
        %s382 = scalar_select %p381, %s380, 1
        %v383 = vld [vmem:[%s310] sm:$0xff]
        %v384 = vld [vmem:[%s310 + $0x8] sm:$0xff]
        %v385 = vld [vmem:[%s310 + $0x10] sm:$0xff]
        %v386 = vld [vmem:[%s310 + $0x18] sm:$0xff]
        %vm387 = vcmask 130048
        %388 = vst.msk [vmem:[#allocation2] sm:$0xff] %vm387, %v383
        %389 = vst.msk [vmem:[#allocation2 + $0x10] sm:$0xff] %vm387, %v384
        %390 = vst.msk [vmem:[#allocation2 + $0x20] sm:$0xff] %vm387, %v385
        %391 = vst.msk [vmem:[#allocation2 + $0x30] sm:$0xff] %vm387, %v386
        %v392 = vld [vmem:[%s319] sm:$0xff]
        %v393 = vld [vmem:[%s319 + $0x8] sm:$0xff]
        %v394 = vld [vmem:[%s319 + $0x10] sm:$0xff]
        %v395 = vld [vmem:[%s319 + $0x18] sm:$0xff]
        %396 = vst.msk [vmem:[#allocation2 + $0x8] sm:$0xff] %vm387, %v392
        %397 = vst.msk [vmem:[#allocation2 + $0x18] sm:$0xff] %vm387, %v393
        %398 = vst.msk [vmem:[#allocation2 + $0x28] sm:$0xff] %vm387, %v394
        %399 = vst.msk [vmem:[#allocation2 + $0x38] sm:$0xff] %vm387, %v395
        %v400 = vld [vmem:[%s328] sm:$0xff]
        %v401 = vld [vmem:[%s328 + $0x8] sm:$0xff]
        %v402 = vld [vmem:[%s328 + $0x10] sm:$0xff]
        %v403 = vld [vmem:[%s328 + $0x18] sm:$0xff]
        %404 = vst.msk [vmem:[#allocation3] sm:$0xff] %vm387, %v400
        %405 = vst.msk [vmem:[#allocation3 + $0x10] sm:$0xff] %vm387, %v401
        %406 = vst.msk [vmem:[#allocation3 + $0x20] sm:$0xff] %vm387, %v402
        %407 = vst.msk [vmem:[#allocation3 + $0x30] sm:$0xff] %vm387, %v403
        %v408 = vld [vmem:[%s337] sm:$0xff]
        %v409 = vld [vmem:[%s337 + $0x8] sm:$0xff]
        %v410 = vld [vmem:[%s337 + $0x10] sm:$0xff]
        %v411 = vld [vmem:[%s337 + $0x18] sm:$0xff]
        %412 = vst.msk [vmem:[#allocation3 + $0x8] sm:$0xff] %vm387, %v408
        %413 = vst.msk [vmem:[#allocation3 + $0x18] sm:$0xff] %vm387, %v409
        %414 = vst.msk [vmem:[#allocation3 + $0x28] sm:$0xff] %vm387, %v410
        %415 = vst.msk [vmem:[#allocation3 + $0x38] sm:$0xff] %vm387, %v411
        %s416 = smul.u32 %s32, 8
        %s417 = ssub.s32 14, %s416
        %p418 = scmp.lt.s32.totalorder %s417, 8
        %s419 = scalar_select %p418, %s417, 8
        %v420 = vld [vmem:[#allocation2] sm:$0xff]
        %v421 = vld [vmem:[#allocation2 + $0x8] sm:$0xff]
        %v422 = vld [vmem:[#allocation2 + $0x10] sm:$0xff]
        %v423 = vld [vmem:[#allocation2 + $0x18] sm:$0xff]
        %v424 = vld [vmem:[#allocation2 + $0x20] sm:$0xff]
        %v425 = vld [vmem:[#allocation2 + $0x28] sm:$0xff]
        %v426 = vld [vmem:[#allocation2 + $0x30] sm:$0xff]
        %v427 = vld [vmem:[#allocation2 + $0x38] sm:$0xff]
        %v428 = vld [vmem:[#allocation3] sm:$0xff]
        %v429 = vld [vmem:[#allocation3 + $0x8] sm:$0xff]
        %v430 = vld [vmem:[#allocation3 + $0x10] sm:$0xff]
        %v431 = vld [vmem:[#allocation3 + $0x18] sm:$0xff]
        %v432 = vld [vmem:[#allocation3 + $0x20] sm:$0xff]
        %v433 = vld [vmem:[#allocation3 + $0x28] sm:$0xff]
        %v434 = vld [vmem:[#allocation3 + $0x30] sm:$0xff]
        %v435 = vld [vmem:[#allocation3 + $0x38] sm:$0xff]
        %v436 = vmul.f32 %v420, %v420
        %v437 = vmul.f32 %v421, %v421
        %v438 = vmul.f32 %v422, %v422
        %v439 = vmul.f32 %v423, %v423
        %v440 = vmul.f32 %v424, %v424
        %v441 = vmul.f32 %v425, %v425
        %v442 = vmul.f32 %v426, %v426
        %v443 = vmul.f32 %v427, %v427
        %v444 = vsel %vm387, %v436, 0.0
        %v445 = vsel %vm387, %v438, 0.0
        %v446 = vadd.f32 %v444, %v445
        %v447 = vsel %vm387, %v440, 0.0
        %v448 = vadd.f32 %v446, %v447
        %v449 = vsel %vm387, %v442, 0.0
        %v450 = vadd.f32 %v448, %v449
        %v451 = vsel %vm387, %v437, 0.0
        %v452 = vsel %vm387, %v439, 0.0
        %v453 = vadd.f32 %v451, %v452
        %v454 = vsel %vm387, %v441, 0.0
        %v455 = vadd.f32 %v453, %v454
        %v456 = vsel %vm387, %v443, 0.0
        %v457 = vadd.f32 %v455, %v456
        %v458 = vrsqrt.pop %v450
        %v459 = vrsqrt.pop %v457
        %v460 = vmul.f32 %v428, %v428
        %v461 = vmul.f32 %v429, %v429
        %v462 = vmul.f32 %v430, %v430
        %v463 = vmul.f32 %v431, %v431
        %v464 = vmul.f32 %v432, %v432
        %v465 = vmul.f32 %v433, %v433
        %v466 = vmul.f32 %v434, %v434
        %v467 = vmul.f32 %v435, %v435
        %v468 = vsel %vm387, %v460, 0.0
        %v469 = vsel %vm387, %v462, 0.0
        %v470 = vadd.f32 %v468, %v469
        %v471 = vsel %vm387, %v464, 0.0
        %v472 = vadd.f32 %v470, %v471
        %v473 = vsel %vm387, %v466, 0.0
        %v474 = vadd.f32 %v472, %v473
        %v475 = vsel %vm387, %v461, 0.0
        %v476 = vsel %vm387, %v463, 0.0
        %v477 = vadd.f32 %v475, %v476
        %v478 = vsel %vm387, %v465, 0.0
        %v479 = vadd.f32 %v477, %v478
        %v480 = vsel %vm387, %v467, 0.0
        %v481 = vadd.f32 %v479, %v480
        %v482 = vrsqrt.pop %v474
        %v483 = vrsqrt.pop %v481
        %vm492 = vcmask 1040384
        %v493 = vrot.slane %v420, 7
        %v494 = vrot.slane %v421, 7
        %v495 = vsel %vm492, %v493, %v494
        %v496 = vrot.slane %v422, 7
        %v497 = vrot.slane %v423, 7
        %v498 = vsel %vm492, %v496, %v497
        %v499 = vrot.slane %v424, 7
        %v500 = vrot.slane %v425, 7
        %v501 = vsel %vm492, %v499, %v500
        %v502 = vrot.slane %v426, 7
        %v503 = vrot.slane %v427, 7
        %v504 = vsel %vm492, %v502, %v503
        %505 = vrot.lane.b32.xlu0 %v493, 1
        %v506 = vpop.permute.xlu0 %505
        %507 = vrot.lane.b32.xlu0 %v495, 1
        %v508 = vpop.permute.xlu0 %507
        %509 = vrot.lane.b32.xlu0 %v496, 1
        %v510 = vpop.permute.xlu0 %509
        %511 = vrot.lane.b32.xlu0 %v498, 1
        %v512 = vpop.permute.xlu0 %511
        %513 = vrot.lane.b32.xlu0 %v499, 1
        %v514 = vpop.permute.xlu0 %513
        %515 = vrot.lane.b32.xlu0 %v501, 1
        %v516 = vpop.permute.xlu0 %515
        %517 = vrot.lane.b32.xlu0 %v502, 1
        %v518 = vpop.permute.xlu0 %517
        %519 = vrot.lane.b32.xlu0 %v504, 1
        %v520 = vpop.permute.xlu0 %519
        %v529 = vmul.f32 %v420, %v506
        %v530 = vmul.f32 %v421, %v508
        %v531 = vmul.f32 %v422, %v510
        %v532 = vmul.f32 %v423, %v512
        %v533 = vmul.f32 %v424, %v514
        %v534 = vmul.f32 %v425, %v516
        %v535 = vmul.f32 %v426, %v518
        %v536 = vmul.f32 %v427, %v520
        %vm537 = vcmask 121865
        %v538 = vsel %vm537, %v529, 0.0
        %v539 = vsel %vm537, %v531, 0.0
        %v540 = vadd.f32 %v538, %v539
        %v541 = vsel %vm537, %v533, 0.0
        %v542 = vadd.f32 %v540, %v541
        %v543 = vsel %vm537, %v535, 0.0
        %v544 = vadd.f32 %v542, %v543
        %vm545 = vcmask 120840
        %v546 = vsel %vm545, %v530, 0.0
        %v547 = vsel %vm545, %v532, 0.0
        %v548 = vadd.f32 %v546, %v547
        %v549 = vsel %vm545, %v534, 0.0
        %v550 = vadd.f32 %v548, %v549
        %v551 = vsel %vm545, %v536, 0.0
        %v552 = vadd.f32 %v550, %v551
        %v555 = vrot.slane %v458, 7
        %v556 = vrot.slane %v459, 7
        %v557 = vsel %vm492, %v555, %v556
        %558 = vrot.lane.b32.xlu0 %v555, 1
        %v559 = vpop.permute.xlu0 %558
        %560 = vrot.lane.b32.xlu0 %v557, 1
        %v561 = vpop.permute.xlu0 %560
        %v564 = vmul.f32 %v458, %v559
        %v565 = vmul.f32 %v459, %v561
        %v566 = vmul.f32 %v544, %v564
        %v567 = vmul.f32 %v552, %v565
        %v576 = vrot.slane %v428, 7
        %v577 = vrot.slane %v429, 7
        %v578 = vsel %vm492, %v576, %v577
        %v579 = vrot.slane %v430, 7
        %v580 = vrot.slane %v431, 7
        %v581 = vsel %vm492, %v579, %v580
        %v582 = vrot.slane %v432, 7
        %v583 = vrot.slane %v433, 7
        %v584 = vsel %vm492, %v582, %v583
        %v585 = vrot.slane %v434, 7
        %v586 = vrot.slane %v435, 7
        %v587 = vsel %vm492, %v585, %v586
        %588 = vrot.lane.b32.xlu0 %v576, 1
        %v589 = vpop.permute.xlu0 %588
        %590 = vrot.lane.b32.xlu0 %v578, 1
        %v591 = vpop.permute.xlu0 %590
        %592 = vrot.lane.b32.xlu0 %v579, 1
        %v593 = vpop.permute.xlu0 %592
        %594 = vrot.lane.b32.xlu0 %v581, 1
        %v595 = vpop.permute.xlu0 %594
        %596 = vrot.lane.b32.xlu0 %v582, 1
        %v597 = vpop.permute.xlu0 %596
        %598 = vrot.lane.b32.xlu0 %v584, 1
        %v599 = vpop.permute.xlu0 %598
        %600 = vrot.lane.b32.xlu0 %v585, 1
        %v601 = vpop.permute.xlu0 %600
        %602 = vrot.lane.b32.xlu0 %v587, 1
        %v603 = vpop.permute.xlu0 %602
        %v612 = vmul.f32 %v428, %v589
        %v613 = vmul.f32 %v429, %v591
        %v614 = vmul.f32 %v430, %v593
        %v615 = vmul.f32 %v431, %v595
        %v616 = vmul.f32 %v432, %v597
        %v617 = vmul.f32 %v433, %v599
        %v618 = vmul.f32 %v434, %v601
        %v619 = vmul.f32 %v435, %v603
        %v620 = vsel %vm537, %v612, 0.0
        %v621 = vsel %vm537, %v614, 0.0
        %v622 = vadd.f32 %v620, %v621
        %v623 = vsel %vm537, %v616, 0.0
        %v624 = vadd.f32 %v622, %v623
        %v625 = vsel %vm537, %v618, 0.0
        %v626 = vadd.f32 %v624, %v625
        %v627 = vsel %vm545, %v613, 0.0
        %v628 = vsel %vm545, %v615, 0.0
        %v629 = vadd.f32 %v627, %v628
        %v630 = vsel %vm545, %v617, 0.0
        %v631 = vadd.f32 %v629, %v630
        %v632 = vsel %vm545, %v619, 0.0
        %v633 = vadd.f32 %v631, %v632
        %v636 = vrot.slane %v482, 7
        %v637 = vrot.slane %v483, 7
        %v638 = vsel %vm492, %v636, %v637
        %639 = vrot.lane.b32.xlu0 %v636, 1
        %v640 = vpop.permute.xlu0 %639
        %641 = vrot.lane.b32.xlu0 %v638, 1
        %v642 = vpop.permute.xlu0 %641
        %v645 = vmul.f32 %v482, %v640
        %v646 = vmul.f32 %v483, %v642
        %v647 = vmul.f32 %v626, %v645
        %v648 = vmul.f32 %v633, %v646
        %v649 = vsub.f32 %v566, %v647
        %v650 = vsub.f32 %v567, %v648
        %v651 = vmul.f32 %v649, %v649
        %v652 = vmul.f32 %v650, %v650
        %v653 = vadd.f32 %v651, 0.0
        %v654 = vadd.f32 %v652, 0.0
        %v663 = vmul.f32 %v420, %v493
        %v664 = vmul.f32 %v421, %v495
        %v665 = vmul.f32 %v422, %v496
        %v666 = vmul.f32 %v423, %v498
        %v667 = vmul.f32 %v424, %v499
        %v668 = vmul.f32 %v425, %v501
        %v669 = vmul.f32 %v426, %v502
        %v670 = vmul.f32 %v427, %v504
        %v671 = vsel %vm537, %v663, 0.0
        %v672 = vsel %vm537, %v665, 0.0
        %v673 = vadd.f32 %v671, %v672
        %v674 = vsel %vm537, %v667, 0.0
        %v675 = vadd.f32 %v673, %v674
        %v676 = vsel %vm537, %v669, 0.0
        %v677 = vadd.f32 %v675, %v676
        %v678 = vsel %vm545, %v664, 0.0
        %v679 = vsel %vm545, %v666, 0.0
        %v680 = vadd.f32 %v678, %v679
        %v681 = vsel %vm545, %v668, 0.0
        %v682 = vadd.f32 %v680, %v681
        %v683 = vsel %vm545, %v670, 0.0
        %v684 = vadd.f32 %v682, %v683
        %v687 = vmul.f32 %v458, %v555
        %v688 = vmul.f32 %v459, %v557
        %v689 = vmul.f32 %v677, %v687
        %v690 = vmul.f32 %v684, %v688
        %v699 = vmul.f32 %v428, %v576
        %v700 = vmul.f32 %v429, %v578
        %v701 = vmul.f32 %v430, %v579
        %v702 = vmul.f32 %v431, %v581
        %v703 = vmul.f32 %v432, %v582
        %v704 = vmul.f32 %v433, %v584
        %v705 = vmul.f32 %v434, %v585
        %v706 = vmul.f32 %v435, %v587
        %v707 = vsel %vm537, %v699, 0.0
        %v708 = vsel %vm537, %v701, 0.0
        %v709 = vadd.f32 %v707, %v708
        %v710 = vsel %vm537, %v703, 0.0
        %v711 = vadd.f32 %v709, %v710
        %v712 = vsel %vm537, %v705, 0.0
        %v713 = vadd.f32 %v711, %v712
        %v714 = vsel %vm545, %v700, 0.0
        %v715 = vsel %vm545, %v702, 0.0
        %v716 = vadd.f32 %v714, %v715
        %v717 = vsel %vm545, %v704, 0.0
        %v718 = vadd.f32 %v716, %v717
        %v719 = vsel %vm545, %v706, 0.0
        %v720 = vadd.f32 %v718, %v719
        %v723 = vmul.f32 %v482, %v636
        %v724 = vmul.f32 %v483, %v638
        %v725 = vmul.f32 %v713, %v723
        %v726 = vmul.f32 %v720, %v724
        %v727 = vsub.f32 %v689, %v725
        %v728 = vsub.f32 %v690, %v726
        %v729 = vmul.f32 %v727, %v727
        %v730 = vmul.f32 %v728, %v728
        %v731 = vadd.f32 %v653, %v729
        %v732 = vadd.f32 %v654, %v730
        %733 = vrot.lane.b32.xlu0 %v493, 127
        %v734 = vpop.permute.xlu0 %733
        %735 = vrot.lane.b32.xlu0 %v495, 127
        %v736 = vpop.permute.xlu0 %735
        %737 = vrot.lane.b32.xlu0 %v496, 127
        %v738 = vpop.permute.xlu0 %737
        %739 = vrot.lane.b32.xlu0 %v498, 127
        %v740 = vpop.permute.xlu0 %739
        %741 = vrot.lane.b32.xlu0 %v499, 127
        %v742 = vpop.permute.xlu0 %741
        %743 = vrot.lane.b32.xlu0 %v501, 127
        %v744 = vpop.permute.xlu0 %743
        %745 = vrot.lane.b32.xlu0 %v502, 127
        %v746 = vpop.permute.xlu0 %745
        %747 = vrot.lane.b32.xlu0 %v504, 127
        %v748 = vpop.permute.xlu0 %747
        %v757 = vmul.f32 %v420, %v734
        %v758 = vmul.f32 %v421, %v736
        %v759 = vmul.f32 %v422, %v738
        %v760 = vmul.f32 %v423, %v740
        %v761 = vmul.f32 %v424, %v742
        %v762 = vmul.f32 %v425, %v744
        %v763 = vmul.f32 %v426, %v746
        %v764 = vmul.f32 %v427, %v748
        %v765 = vsel %vm537, %v757, 0.0
        %v766 = vsel %vm537, %v759, 0.0
        %v767 = vadd.f32 %v765, %v766
        %v768 = vsel %vm537, %v761, 0.0
        %v769 = vadd.f32 %v767, %v768
        %v770 = vsel %vm537, %v763, 0.0
        %v771 = vadd.f32 %v769, %v770
        %v772 = vsel %vm545, %v758, 0.0
        %v773 = vsel %vm545, %v760, 0.0
        %v774 = vadd.f32 %v772, %v773
        %v775 = vsel %vm545, %v762, 0.0
        %v776 = vadd.f32 %v774, %v775
        %v777 = vsel %vm545, %v764, 0.0
        %v778 = vadd.f32 %v776, %v777
        %779 = vrot.lane.b32.xlu0 %v555, 127
        %v780 = vpop.permute.xlu0 %779
        %781 = vrot.lane.b32.xlu0 %v557, 127
        %v782 = vpop.permute.xlu0 %781
        %v785 = vmul.f32 %v458, %v780
        %v786 = vmul.f32 %v459, %v782
        %v787 = vmul.f32 %v771, %v785
        %v788 = vmul.f32 %v778, %v786
        %789 = vrot.lane.b32.xlu0 %v576, 127
        %v790 = vpop.permute.xlu0 %789
        %791 = vrot.lane.b32.xlu0 %v578, 127
        %v792 = vpop.permute.xlu0 %791
        %793 = vrot.lane.b32.xlu0 %v579, 127
        %v794 = vpop.permute.xlu0 %793
        %795 = vrot.lane.b32.xlu0 %v581, 127
        %v796 = vpop.permute.xlu0 %795
        %797 = vrot.lane.b32.xlu0 %v582, 127
        %v798 = vpop.permute.xlu0 %797
        %799 = vrot.lane.b32.xlu0 %v584, 127
        %v800 = vpop.permute.xlu0 %799
        %801 = vrot.lane.b32.xlu0 %v585, 127
        %v802 = vpop.permute.xlu0 %801
        %803 = vrot.lane.b32.xlu0 %v587, 127
        %v804 = vpop.permute.xlu0 %803
        %v813 = vmul.f32 %v428, %v790
        %v814 = vmul.f32 %v429, %v792
        %v815 = vmul.f32 %v430, %v794
        %v816 = vmul.f32 %v431, %v796
        %v817 = vmul.f32 %v432, %v798
        %v818 = vmul.f32 %v433, %v800
        %v819 = vmul.f32 %v434, %v802
        %v820 = vmul.f32 %v435, %v804
        %v821 = vsel %vm537, %v813, 0.0
        %v822 = vsel %vm537, %v815, 0.0
        %v823 = vadd.f32 %v821, %v822
        %v824 = vsel %vm537, %v817, 0.0
        %v825 = vadd.f32 %v823, %v824
        %v826 = vsel %vm537, %v819, 0.0
        %v827 = vadd.f32 %v825, %v826
        %v828 = vsel %vm545, %v814, 0.0
        %v829 = vsel %vm545, %v816, 0.0
        %v830 = vadd.f32 %v828, %v829
        %v831 = vsel %vm545, %v818, 0.0
        %v832 = vadd.f32 %v830, %v831
        %v833 = vsel %vm545, %v820, 0.0
        %v834 = vadd.f32 %v832, %v833
        %835 = vrot.lane.b32.xlu0 %v636, 127
        %v836 = vpop.permute.xlu0 %835
        %837 = vrot.lane.b32.xlu0 %v638, 127
        %v838 = vpop.permute.xlu0 %837
        %v841 = vmul.f32 %v482, %v836
        %v842 = vmul.f32 %v483, %v838
        %v843 = vmul.f32 %v827, %v841
        %v844 = vmul.f32 %v834, %v842
        %v845 = vsub.f32 %v787, %v843
        %v846 = vsub.f32 %v788, %v844
        %v847 = vmul.f32 %v845, %v845
        %v848 = vmul.f32 %v846, %v846
        %v849 = vadd.f32 %v731, %v847
        %v850 = vadd.f32 %v732, %v848
        %851 = vrot.lane.b32.xlu0 %v420, 1
        %v852 = vpop.permute.xlu0 %851
        %853 = vrot.lane.b32.xlu0 %v421, 1
        %v854 = vpop.permute.xlu0 %853
        %855 = vrot.lane.b32.xlu0 %v422, 1
        %v856 = vpop.permute.xlu0 %855
        %857 = vrot.lane.b32.xlu0 %v423, 1
        %v858 = vpop.permute.xlu0 %857
        %859 = vrot.lane.b32.xlu0 %v424, 1
        %v860 = vpop.permute.xlu0 %859
        %861 = vrot.lane.b32.xlu0 %v425, 1
        %v862 = vpop.permute.xlu0 %861
        %863 = vrot.lane.b32.xlu0 %v426, 1
        %v864 = vpop.permute.xlu0 %863
        %865 = vrot.lane.b32.xlu0 %v427, 1
        %v866 = vpop.permute.xlu0 %865
        %v875 = vmul.f32 %v420, %v852
        %v876 = vmul.f32 %v421, %v854
        %v877 = vmul.f32 %v422, %v856
        %v878 = vmul.f32 %v423, %v858
        %v879 = vmul.f32 %v424, %v860
        %v880 = vmul.f32 %v425, %v862
        %v881 = vmul.f32 %v426, %v864
        %v882 = vmul.f32 %v427, %v866
        %v883 = vsel %vm537, %v875, 0.0
        %v884 = vsel %vm537, %v877, 0.0
        %v885 = vadd.f32 %v883, %v884
        %v886 = vsel %vm537, %v879, 0.0
        %v887 = vadd.f32 %v885, %v886
        %v888 = vsel %vm537, %v881, 0.0
        %v889 = vadd.f32 %v887, %v888
        %v890 = vsel %vm545, %v876, 0.0
        %v891 = vsel %vm545, %v878, 0.0
        %v892 = vadd.f32 %v890, %v891
        %v893 = vsel %vm545, %v880, 0.0
        %v894 = vadd.f32 %v892, %v893
        %v895 = vsel %vm545, %v882, 0.0
        %v896 = vadd.f32 %v894, %v895
        %897 = vrot.lane.b32.xlu0 %v458, 1
        %v898 = vpop.permute.xlu0 %897
        %899 = vrot.lane.b32.xlu0 %v459, 1
        %v900 = vpop.permute.xlu0 %899
        %v903 = vmul.f32 %v458, %v898
        %v904 = vmul.f32 %v459, %v900
        %v905 = vmul.f32 %v889, %v903
        %v906 = vmul.f32 %v896, %v904
        %907 = vrot.lane.b32.xlu0 %v428, 1
        %v908 = vpop.permute.xlu0 %907
        %909 = vrot.lane.b32.xlu0 %v429, 1
        %v910 = vpop.permute.xlu0 %909
        %911 = vrot.lane.b32.xlu0 %v430, 1
        %v912 = vpop.permute.xlu0 %911
        %913 = vrot.lane.b32.xlu0 %v431, 1
        %v914 = vpop.permute.xlu0 %913
        %915 = vrot.lane.b32.xlu0 %v432, 1
        %v916 = vpop.permute.xlu0 %915
        %917 = vrot.lane.b32.xlu0 %v433, 1
        %v918 = vpop.permute.xlu0 %917
        %919 = vrot.lane.b32.xlu0 %v434, 1
        %v920 = vpop.permute.xlu0 %919
        %921 = vrot.lane.b32.xlu0 %v435, 1
        %v922 = vpop.permute.xlu0 %921
        %v931 = vmul.f32 %v428, %v908
        %v932 = vmul.f32 %v429, %v910
        %v933 = vmul.f32 %v430, %v912
        %v934 = vmul.f32 %v431, %v914
        %v935 = vmul.f32 %v432, %v916
        %v936 = vmul.f32 %v433, %v918
        %v937 = vmul.f32 %v434, %v920
        %v938 = vmul.f32 %v435, %v922
        %v939 = vsel %vm537, %v931, 0.0
        %v940 = vsel %vm537, %v933, 0.0
        %v941 = vadd.f32 %v939, %v940
        %v942 = vsel %vm537, %v935, 0.0
        %v943 = vadd.f32 %v941, %v942
        %v944 = vsel %vm537, %v937, 0.0
        %v945 = vadd.f32 %v943, %v944
        %v946 = vsel %vm545, %v932, 0.0
        %v947 = vsel %vm545, %v934, 0.0
        %v948 = vadd.f32 %v946, %v947
        %v949 = vsel %vm545, %v936, 0.0
        %v950 = vadd.f32 %v948, %v949
        %v951 = vsel %vm545, %v938, 0.0
        %v952 = vadd.f32 %v950, %v951
        %953 = vrot.lane.b32.xlu0 %v482, 1
        %v954 = vpop.permute.xlu0 %953
        %955 = vrot.lane.b32.xlu0 %v483, 1
        %v956 = vpop.permute.xlu0 %955
        %v959 = vmul.f32 %v482, %v954
        %v960 = vmul.f32 %v483, %v956
        %v961 = vmul.f32 %v945, %v959
        %v962 = vmul.f32 %v952, %v960
        %v963 = vsub.f32 %v905, %v961
        %v964 = vsub.f32 %v906, %v962
        %v965 = vmul.f32 %v963, %v963
        %v966 = vmul.f32 %v964, %v964
        %v967 = vadd.f32 %v849, %v965
        %v968 = vadd.f32 %v850, %v966
        %969 = vrot.lane.b32.xlu0 %v420, 127
        %v970 = vpop.permute.xlu0 %969
        %971 = vrot.lane.b32.xlu0 %v421, 127
        %v972 = vpop.permute.xlu0 %971
        %973 = vrot.lane.b32.xlu0 %v422, 127
        %v974 = vpop.permute.xlu0 %973
        %975 = vrot.lane.b32.xlu0 %v423, 127
        %v976 = vpop.permute.xlu0 %975
        %977 = vrot.lane.b32.xlu0 %v424, 127
        %v978 = vpop.permute.xlu0 %977
        %979 = vrot.lane.b32.xlu0 %v425, 127
        %v980 = vpop.permute.xlu0 %979
        %981 = vrot.lane.b32.xlu0 %v426, 127
        %v982 = vpop.permute.xlu0 %981
        %983 = vrot.lane.b32.xlu0 %v427, 127
        %v984 = vpop.permute.xlu0 %983
        %v993 = vmul.f32 %v420, %v970
        %v994 = vmul.f32 %v421, %v972
        %v995 = vmul.f32 %v422, %v974
        %v996 = vmul.f32 %v423, %v976
        %v997 = vmul.f32 %v424, %v978
        %v998 = vmul.f32 %v425, %v980
        %v999 = vmul.f32 %v426, %v982
        %v1000 = vmul.f32 %v427, %v984
        %v1001 = vsel %vm537, %v993, 0.0
        %v1002 = vsel %vm537, %v995, 0.0
        %v1003 = vadd.f32 %v1001, %v1002
        %v1004 = vsel %vm537, %v997, 0.0
        %v1005 = vadd.f32 %v1003, %v1004
        %v1006 = vsel %vm537, %v999, 0.0
        %v1007 = vadd.f32 %v1005, %v1006
        %v1008 = vsel %vm545, %v994, 0.0
        %v1009 = vsel %vm545, %v996, 0.0
        %v1010 = vadd.f32 %v1008, %v1009
        %v1011 = vsel %vm545, %v998, 0.0
        %v1012 = vadd.f32 %v1010, %v1011
        %v1013 = vsel %vm545, %v1000, 0.0
        %v1014 = vadd.f32 %v1012, %v1013
        %1015 = vrot.lane.b32.xlu0 %v458, 127
        %v1016 = vpop.permute.xlu0 %1015
        %1017 = vrot.lane.b32.xlu0 %v459, 127
        %v1018 = vpop.permute.xlu0 %1017
        %v1021 = vmul.f32 %v458, %v1016
        %v1022 = vmul.f32 %v459, %v1018
        %v1023 = vmul.f32 %v1007, %v1021
        %v1024 = vmul.f32 %v1014, %v1022
        %1025 = vrot.lane.b32.xlu0 %v428, 127
        %v1026 = vpop.permute.xlu0 %1025
        %1027 = vrot.lane.b32.xlu0 %v429, 127
        %v1028 = vpop.permute.xlu0 %1027
        %1029 = vrot.lane.b32.xlu0 %v430, 127
        %v1030 = vpop.permute.xlu0 %1029
        %1031 = vrot.lane.b32.xlu0 %v431, 127
        %v1032 = vpop.permute.xlu0 %1031
        %1033 = vrot.lane.b32.xlu0 %v432, 127
        %v1034 = vpop.permute.xlu0 %1033
        %1035 = vrot.lane.b32.xlu0 %v433, 127
        %v1036 = vpop.permute.xlu0 %1035
        %1037 = vrot.lane.b32.xlu0 %v434, 127
        %v1038 = vpop.permute.xlu0 %1037
        %1039 = vrot.lane.b32.xlu0 %v435, 127
        %v1040 = vpop.permute.xlu0 %1039
        %v1049 = vmul.f32 %v428, %v1026
        %v1050 = vmul.f32 %v429, %v1028
        %v1051 = vmul.f32 %v430, %v1030
        %v1052 = vmul.f32 %v431, %v1032
        %v1053 = vmul.f32 %v432, %v1034
        %v1054 = vmul.f32 %v433, %v1036
        %v1055 = vmul.f32 %v434, %v1038
        %v1056 = vmul.f32 %v435, %v1040
        %v1057 = vsel %vm537, %v1049, 0.0
        %v1058 = vsel %vm537, %v1051, 0.0
        %v1059 = vadd.f32 %v1057, %v1058
        %v1060 = vsel %vm537, %v1053, 0.0
        %v1061 = vadd.f32 %v1059, %v1060
        %v1062 = vsel %vm537, %v1055, 0.0
        %v1063 = vadd.f32 %v1061, %v1062
        %v1064 = vsel %vm545, %v1050, 0.0
        %v1065 = vsel %vm545, %v1052, 0.0
        %v1066 = vadd.f32 %v1064, %v1065
        %v1067 = vsel %vm545, %v1054, 0.0
        %v1068 = vadd.f32 %v1066, %v1067
        %v1069 = vsel %vm545, %v1056, 0.0
        %v1070 = vadd.f32 %v1068, %v1069
        %1071 = vrot.lane.b32.xlu0 %v482, 127
        %v1072 = vpop.permute.xlu0 %1071
        %1073 = vrot.lane.b32.xlu0 %v483, 127
        %v1074 = vpop.permute.xlu0 %1073
        %v1077 = vmul.f32 %v482, %v1072
        %v1078 = vmul.f32 %v483, %v1074
        %v1079 = vmul.f32 %v1063, %v1077
        %v1080 = vmul.f32 %v1070, %v1078
        %v1081 = vsub.f32 %v1023, %v1079
        %v1082 = vsub.f32 %v1024, %v1080
        %v1083 = vmul.f32 %v1081, %v1081
        %v1084 = vmul.f32 %v1082, %v1082
        %v1085 = vadd.f32 %v967, %v1083
        %v1086 = vadd.f32 %v968, %v1084
        %vm1087 = vcmask 1046528
        %v1088 = vrot.slane %v420, 1
        %v1089 = vrot.slane %v421, 1
        %v1090 = vsel %vm1087, %v1088, %v1089
        %v1091 = vrot.slane %v422, 1
        %v1092 = vrot.slane %v423, 1
        %v1093 = vsel %vm1087, %v1091, %v1092
        %v1094 = vrot.slane %v424, 1
        %v1095 = vrot.slane %v425, 1
        %v1096 = vsel %vm1087, %v1094, %v1095
        %v1097 = vrot.slane %v426, 1
        %v1098 = vrot.slane %v427, 1
        %v1099 = vsel %vm1087, %v1097, %v1098
        %1100 = vrot.lane.b32.xlu0 %v1090, 1
        %v1101 = vpop.permute.xlu0 %1100
        %1102 = vrot.lane.b32.xlu0 %v1089, 1
        %v1103 = vpop.permute.xlu0 %1102
        %1104 = vrot.lane.b32.xlu0 %v1093, 1
        %v1105 = vpop.permute.xlu0 %1104
        %1106 = vrot.lane.b32.xlu0 %v1092, 1
        %v1107 = vpop.permute.xlu0 %1106
        %1108 = vrot.lane.b32.xlu0 %v1096, 1
        %v1109 = vpop.permute.xlu0 %1108
        %1110 = vrot.lane.b32.xlu0 %v1095, 1
        %v1111 = vpop.permute.xlu0 %1110
        %1112 = vrot.lane.b32.xlu0 %v1099, 1
        %v1113 = vpop.permute.xlu0 %1112
        %1114 = vrot.lane.b32.xlu0 %v1098, 1
        %v1115 = vpop.permute.xlu0 %1114
        %v1124 = vmul.f32 %v420, %v1101
        %v1125 = vmul.f32 %v421, %v1103
        %v1126 = vmul.f32 %v422, %v1105
        %v1127 = vmul.f32 %v423, %v1107
        %v1128 = vmul.f32 %v424, %v1109
        %v1129 = vmul.f32 %v425, %v1111
        %v1130 = vmul.f32 %v426, %v1113
        %v1131 = vmul.f32 %v427, %v1115
        %v1132 = vsel %vm537, %v1124, 0.0
        %v1133 = vsel %vm537, %v1126, 0.0
        %v1134 = vadd.f32 %v1132, %v1133
        %v1135 = vsel %vm537, %v1128, 0.0
        %v1136 = vadd.f32 %v1134, %v1135
        %v1137 = vsel %vm537, %v1130, 0.0
        %v1138 = vadd.f32 %v1136, %v1137
        %v1139 = vsel %vm545, %v1125, 0.0
        %v1140 = vsel %vm545, %v1127, 0.0
        %v1141 = vadd.f32 %v1139, %v1140
        %v1142 = vsel %vm545, %v1129, 0.0
        %v1143 = vadd.f32 %v1141, %v1142
        %v1144 = vsel %vm545, %v1131, 0.0
        %v1145 = vadd.f32 %v1143, %v1144
        %v1146 = vrot.slane %v458, 1
        %v1147 = vrot.slane %v459, 1
        %v1148 = vsel %vm1087, %v1146, %v1147
        %1149 = vrot.lane.b32.xlu0 %v1148, 1
        %v1150 = vpop.permute.xlu0 %1149
        %1151 = vrot.lane.b32.xlu0 %v1147, 1
        %v1152 = vpop.permute.xlu0 %1151
        %v1155 = vmul.f32 %v458, %v1150
        %v1156 = vmul.f32 %v459, %v1152
        %v1157 = vmul.f32 %v1138, %v1155
        %v1158 = vmul.f32 %v1145, %v1156
        %v1159 = vrot.slane %v428, 1
        %v1160 = vrot.slane %v429, 1
        %v1161 = vsel %vm1087, %v1159, %v1160
        %v1162 = vrot.slane %v430, 1
        %v1163 = vrot.slane %v431, 1
        %v1164 = vsel %vm1087, %v1162, %v1163
        %v1165 = vrot.slane %v432, 1
        %v1166 = vrot.slane %v433, 1
        %v1167 = vsel %vm1087, %v1165, %v1166
        %v1168 = vrot.slane %v434, 1
        %v1169 = vrot.slane %v435, 1
        %v1170 = vsel %vm1087, %v1168, %v1169
        %1171 = vrot.lane.b32.xlu0 %v1161, 1
        %v1172 = vpop.permute.xlu0 %1171
        %1173 = vrot.lane.b32.xlu0 %v1160, 1
        %v1174 = vpop.permute.xlu0 %1173
        %1175 = vrot.lane.b32.xlu0 %v1164, 1
        %v1176 = vpop.permute.xlu0 %1175
        %1177 = vrot.lane.b32.xlu0 %v1163, 1
        %v1178 = vpop.permute.xlu0 %1177
        %1179 = vrot.lane.b32.xlu0 %v1167, 1
        %v1180 = vpop.permute.xlu0 %1179
        %1181 = vrot.lane.b32.xlu0 %v1166, 1
        %v1182 = vpop.permute.xlu0 %1181
        %1183 = vrot.lane.b32.xlu0 %v1170, 1
        %v1184 = vpop.permute.xlu0 %1183
        %1185 = vrot.lane.b32.xlu0 %v1169, 1
        %v1186 = vpop.permute.xlu0 %1185
        %v1195 = vmul.f32 %v428, %v1172
        %v1196 = vmul.f32 %v429, %v1174
        %v1197 = vmul.f32 %v430, %v1176
        %v1198 = vmul.f32 %v431, %v1178
        %v1199 = vmul.f32 %v432, %v1180
        %v1200 = vmul.f32 %v433, %v1182
        %v1201 = vmul.f32 %v434, %v1184
        %v1202 = vmul.f32 %v435, %v1186
        %v1203 = vsel %vm537, %v1195, 0.0
        %v1204 = vsel %vm537, %v1197, 0.0
        %v1205 = vadd.f32 %v1203, %v1204
        %v1206 = vsel %vm537, %v1199, 0.0
        %v1207 = vadd.f32 %v1205, %v1206
        %v1208 = vsel %vm537, %v1201, 0.0
        %v1209 = vadd.f32 %v1207, %v1208
        %v1210 = vsel %vm545, %v1196, 0.0
        %v1211 = vsel %vm545, %v1198, 0.0
        %v1212 = vadd.f32 %v1210, %v1211
        %v1213 = vsel %vm545, %v1200, 0.0
        %v1214 = vadd.f32 %v1212, %v1213
        %v1215 = vsel %vm545, %v1202, 0.0
        %v1216 = vadd.f32 %v1214, %v1215
        %v1217 = vrot.slane %v482, 1
        %v1218 = vrot.slane %v483, 1
        %v1219 = vsel %vm1087, %v1217, %v1218
        %1220 = vrot.lane.b32.xlu0 %v1219, 1
        %v1221 = vpop.permute.xlu0 %1220
        %1222 = vrot.lane.b32.xlu0 %v1218, 1
        %v1223 = vpop.permute.xlu0 %1222
        %v1226 = vmul.f32 %v482, %v1221
        %v1227 = vmul.f32 %v483, %v1223
        %v1228 = vmul.f32 %v1209, %v1226
        %v1229 = vmul.f32 %v1216, %v1227
        %v1230 = vsub.f32 %v1157, %v1228
        %v1231 = vsub.f32 %v1158, %v1229
        %v1232 = vmul.f32 %v1230, %v1230
        %v1233 = vmul.f32 %v1231, %v1231
        %v1234 = vadd.f32 %v1085, %v1232
        %v1235 = vadd.f32 %v1086, %v1233
        %v1244 = vmul.f32 %v420, %v1090
        %v1245 = vmul.f32 %v421, %v1089
        %v1246 = vmul.f32 %v422, %v1093
        %v1247 = vmul.f32 %v423, %v1092
        %v1248 = vmul.f32 %v424, %v1096
        %v1249 = vmul.f32 %v425, %v1095
        %v1250 = vmul.f32 %v426, %v1099
        %v1251 = vmul.f32 %v427, %v1098
        %v1252 = vsel %vm537, %v1244, 0.0
        %v1253 = vsel %vm537, %v1246, 0.0
        %v1254 = vadd.f32 %v1252, %v1253
        %v1255 = vsel %vm537, %v1248, 0.0
        %v1256 = vadd.f32 %v1254, %v1255
        %v1257 = vsel %vm537, %v1250, 0.0
        %v1258 = vadd.f32 %v1256, %v1257
        %v1259 = vsel %vm545, %v1245, 0.0
        %v1260 = vsel %vm545, %v1247, 0.0
        %v1261 = vadd.f32 %v1259, %v1260
        %v1262 = vsel %vm545, %v1249, 0.0
        %v1263 = vadd.f32 %v1261, %v1262
        %v1264 = vsel %vm545, %v1251, 0.0
        %v1265 = vadd.f32 %v1263, %v1264
        %v1268 = vmul.f32 %v458, %v1148
        %v1269 = vmul.f32 %v459, %v1147
        %v1270 = vmul.f32 %v1258, %v1268
        %v1271 = vmul.f32 %v1265, %v1269
        %v1280 = vmul.f32 %v428, %v1161
        %v1281 = vmul.f32 %v429, %v1160
        %v1282 = vmul.f32 %v430, %v1164
        %v1283 = vmul.f32 %v431, %v1163
        %v1284 = vmul.f32 %v432, %v1167
        %v1285 = vmul.f32 %v433, %v1166
        %v1286 = vmul.f32 %v434, %v1170
        %v1287 = vmul.f32 %v435, %v1169
        %v1288 = vsel %vm537, %v1280, 0.0
        %v1289 = vsel %vm537, %v1282, 0.0
        %v1290 = vadd.f32 %v1288, %v1289
        %v1291 = vsel %vm537, %v1284, 0.0
        %v1292 = vadd.f32 %v1290, %v1291
        %v1293 = vsel %vm537, %v1286, 0.0
        %v1294 = vadd.f32 %v1292, %v1293
        %v1295 = vsel %vm545, %v1281, 0.0
        %v1296 = vsel %vm545, %v1283, 0.0
        %v1297 = vadd.f32 %v1295, %v1296
        %v1298 = vsel %vm545, %v1285, 0.0
        %v1299 = vadd.f32 %v1297, %v1298
        %v1300 = vsel %vm545, %v1287, 0.0
        %v1301 = vadd.f32 %v1299, %v1300
        %v1304 = vmul.f32 %v482, %v1219
        %v1305 = vmul.f32 %v483, %v1218
        %v1306 = vmul.f32 %v1294, %v1304
        %v1307 = vmul.f32 %v1301, %v1305
        %v1308 = vsub.f32 %v1270, %v1306
        %v1309 = vsub.f32 %v1271, %v1307
        %v1310 = vmul.f32 %v1308, %v1308
        %v1311 = vmul.f32 %v1309, %v1309
        %v1312 = vadd.f32 %v1234, %v1310
        %v1313 = vadd.f32 %v1235, %v1311
        %1314 = vrot.lane.b32.xlu0 %v1090, 127
        %v1315 = vpop.permute.xlu0 %1314
        %1316 = vrot.lane.b32.xlu0 %v1089, 127
        %v1317 = vpop.permute.xlu0 %1316
        %1318 = vrot.lane.b32.xlu0 %v1093, 127
        %v1319 = vpop.permute.xlu0 %1318
        %1320 = vrot.lane.b32.xlu0 %v1092, 127
        %v1321 = vpop.permute.xlu0 %1320
        %1322 = vrot.lane.b32.xlu0 %v1096, 127
        %v1323 = vpop.permute.xlu0 %1322
        %1324 = vrot.lane.b32.xlu0 %v1095, 127
        %v1325 = vpop.permute.xlu0 %1324
        %1326 = vrot.lane.b32.xlu0 %v1099, 127
        %v1327 = vpop.permute.xlu0 %1326
        %1328 = vrot.lane.b32.xlu0 %v1098, 127
        %v1329 = vpop.permute.xlu0 %1328
        %v1338 = vmul.f32 %v420, %v1315
        %v1339 = vmul.f32 %v421, %v1317
        %v1340 = vmul.f32 %v422, %v1319
        %v1341 = vmul.f32 %v423, %v1321
        %v1342 = vmul.f32 %v424, %v1323
        %v1343 = vmul.f32 %v425, %v1325
        %v1344 = vmul.f32 %v426, %v1327
        %v1345 = vmul.f32 %v427, %v1329
        %v1346 = vsel %vm537, %v1338, 0.0
        %v1347 = vsel %vm537, %v1340, 0.0
        %v1348 = vadd.f32 %v1346, %v1347
        %v1349 = vsel %vm537, %v1342, 0.0
        %v1350 = vadd.f32 %v1348, %v1349
        %v1351 = vsel %vm537, %v1344, 0.0
        %v1352 = vadd.f32 %v1350, %v1351
        %v1353 = vsel %vm545, %v1339, 0.0
        %v1354 = vsel %vm545, %v1341, 0.0
        %v1355 = vadd.f32 %v1353, %v1354
        %v1356 = vsel %vm545, %v1343, 0.0
        %v1357 = vadd.f32 %v1355, %v1356
        %v1358 = vsel %vm545, %v1345, 0.0
        %v1359 = vadd.f32 %v1357, %v1358
        %1360 = vrot.lane.b32.xlu0 %v1148, 127
        %v1361 = vpop.permute.xlu0 %1360
        %1362 = vrot.lane.b32.xlu0 %v1147, 127
        %v1363 = vpop.permute.xlu0 %1362
        %v1366 = vmul.f32 %v458, %v1361
        %v1367 = vmul.f32 %v459, %v1363
        %v1368 = vmul.f32 %v1352, %v1366
        %v1369 = vmul.f32 %v1359, %v1367
        %1370 = vrot.lane.b32.xlu0 %v1161, 127
        %v1371 = vpop.permute.xlu0 %1370
        %1372 = vrot.lane.b32.xlu0 %v1160, 127
        %v1373 = vpop.permute.xlu0 %1372
        %1374 = vrot.lane.b32.xlu0 %v1164, 127
        %v1375 = vpop.permute.xlu0 %1374
        %1376 = vrot.lane.b32.xlu0 %v1163, 127
        %v1377 = vpop.permute.xlu0 %1376
        %1378 = vrot.lane.b32.xlu0 %v1167, 127
        %v1379 = vpop.permute.xlu0 %1378
        %1380 = vrot.lane.b32.xlu0 %v1166, 127
        %v1381 = vpop.permute.xlu0 %1380
        %1382 = vrot.lane.b32.xlu0 %v1170, 127
        %v1383 = vpop.permute.xlu0 %1382
        %1384 = vrot.lane.b32.xlu0 %v1169, 127
        %v1385 = vpop.permute.xlu0 %1384
        %v1394 = vmul.f32 %v428, %v1371
        %v1395 = vmul.f32 %v429, %v1373
        %v1396 = vmul.f32 %v430, %v1375
        %v1397 = vmul.f32 %v431, %v1377
        %v1398 = vmul.f32 %v432, %v1379
        %v1399 = vmul.f32 %v433, %v1381
        %v1400 = vmul.f32 %v434, %v1383
        %v1401 = vmul.f32 %v435, %v1385
        %v1402 = vsel %vm537, %v1394, 0.0
        %v1403 = vsel %vm537, %v1396, 0.0
        %v1404 = vadd.f32 %v1402, %v1403
        %v1405 = vsel %vm537, %v1398, 0.0
        %v1406 = vadd.f32 %v1404, %v1405
        %v1407 = vsel %vm537, %v1400, 0.0
        %v1408 = vadd.f32 %v1406, %v1407
        %v1409 = vsel %vm545, %v1395, 0.0
        %v1410 = vsel %vm545, %v1397, 0.0
        %v1411 = vadd.f32 %v1409, %v1410
        %v1412 = vsel %vm545, %v1399, 0.0
        %v1413 = vadd.f32 %v1411, %v1412
        %v1414 = vsel %vm545, %v1401, 0.0
        %v1415 = vadd.f32 %v1413, %v1414
        %1416 = vrot.lane.b32.xlu0 %v1219, 127
        %v1417 = vpop.permute.xlu0 %1416
        %1418 = vrot.lane.b32.xlu0 %v1218, 127
        %v1419 = vpop.permute.xlu0 %1418
        %v1422 = vmul.f32 %v482, %v1417
        %v1423 = vmul.f32 %v483, %v1419
        %v1424 = vmul.f32 %v1408, %v1422
        %v1425 = vmul.f32 %v1415, %v1423
        %v1426 = vsub.f32 %v1368, %v1424
        %v1427 = vsub.f32 %v1369, %v1425
        %v1428 = vmul.f32 %v1426, %v1426
        %v1429 = vmul.f32 %v1427, %v1427
        %v1430 = vadd.f32 %v1312, %v1428
        %v1431 = vadd.f32 %v1313, %v1429
        %v1432 = vlaneseq
        %v1433 = vshrl.u32 %v1432, 7
        %v1434 = vadd.s32 %v1433, 8
        %v1435 = vstv %s419
        %vm1436 = vcmp.lt.s32.totalorder %v1433, %v1435
        %vm1437 = vcmp.lt.s32.totalorder %v1434, %v1435
        %v1440 = vrot.slane %v1430, 1
        %v1441 = vrot.slane %v1431, 1
        %v1442 = vsel %vm1087, %v1440, %v1441
        %1443 = vrot.lane.b32.xlu0 %v1442, 127
        %v1444 = vpop.permute.xlu0 %1443
        %1445 = vrot.lane.b32.xlu0 %v1441, 127
        %v1446 = vpop.permute.xlu0 %1445
        %v1449 = vsel %vm1436, %v1444, 0.0
        %v1450 = vsel %vm1437, %v1446, 0.0
        %vm1451 = vcmask 113664
        %v1452 = vsel %vm1451, %v1449, 0.0
        %vm1453 = vcmask 111616
        %v1454 = vsel %vm1453, %v1450, 0.0
        %v1455 = vadd.f32 %v1452, %v1454
        %1456 = vadd.xlane.f32.xlu0 %v1455
        %v1457 = vpop.xlane.xlu0 %1456
        %v1458 = vrot.slane %v1457, 4
        %v1459 = vadd.f32 %v1457, %v1458
        %v1460 = vrot.slane %v1459, 2
        %v1461 = vadd.f32 %v1459, %v1460
        %v1462 = vrot.slane %v1461, 1
        %v1463 = vadd.f32 %v1461, %v1462
        %s1464 = vtos %v1463
        %v1465 = vstv %s1464
        %1466 = vst [vmem:[%s376] sm:$0xff] %v1465
        %s1467 = sand.u32 %s173, 1
        %s1468 = scalar_lea.sflag [#allocation6], %s1467
        %s1469 = sand.u32 %s173, 1
        %s1470 = smul.addr %s1469, 8
        %s1471 = scalar_lea.vmem [#allocation12], %s1470
        // Predicated region
        $region53: #{tpu_custom_call.1} parent=35 // pred_check
          %p1472 = pneg %p183
        $region54: #{tpu_custom_call.1} parent=35 // pred_check_branch
          %1474 = sbr.rel (%p1472) target = $region56
        $region55: #{tpu_custom_call.1} parent=35 // pred_region
          %s1476 = ssub.s32 128, 128
          %1477 = vsyncadd %s1468, %s1476
          %s1478 = smul.addr %s31, 2
          %s1479 = sadd.s32 %s32, %s1478
          %s1480 = smul.addr %s1479, 128
          %s1481 = scalar_lea.hbm %s4, %s1480
          %s1483 = sshll.u32 %s1471, 4
          %s1484 = int_to_ptr.vmem [resolvable:$true] %s1483
          %1486 = dma.vmem_to_hbm [thread:$0]  %s1484, 128, %s1481, %s1468
        $region56: #{tpu_custom_call.1} parent=35 // pred_fallthru
          _
      $region36: #{tpu_custom_call.1} parent=5 // pred_fallthru
        _
      %p1487 = scmp.le.s32.totalorder 2, %s22
      // Predicated region
      $region57: #{tpu_custom_call.1} parent=5 // pred_check
        %p1488 = pneg %p1487
      $region58: #{tpu_custom_call.1} parent=5 // pred_check_branch
        %1490 = sbr.rel (%p1488) target = $region60
      $region59: #{tpu_custom_call.1} parent=5 // pred_region
        %s1491 = ssub.s32 %s22, 2
        // Predicated region
        $region61: #{tpu_custom_call.1} parent=59 // pred_check
          %p1492 = pneg %p189
        $region62: #{tpu_custom_call.1} parent=59 // pred_check_branch
          %1494 = sbr.rel (%p1492) target = $region64
        $region63: #{tpu_custom_call.1} parent=59 // pred_region
          %s1495 = sand.u32 %s174, 1
          %s1496 = scalar_lea.sflag [#allocation6], %s1495
          %s1497 = sand.u32 %s174, 1
          %s1498 = smul.addr %s1497, 8
          %s1499 = scalar_lea.vmem [#allocation12], %s1498
          %1500 = dma.done %s1496, 128
        $region64: #{tpu_custom_call.1} parent=59 // pred_fallthru
          _
      $region60: #{tpu_custom_call.1} parent=5 // pred_fallthru
        _
    $region6: #{tpu_custom_call.1} parent=1 // loop_footer
      %s26 = sadd.s32 1, %s22
    $region7: #{tpu_custom_call.1} parent=1 // loop_footer_branch
      %21 = sbr.rel target = $region3
    $region8: #{tpu_custom_call.1} parent=1 // loop_exit
      _
    %1501 = vsyncpa [#allocation5], 1
    %s1502 = scalar_lea.sflag [#allocation5], 1
    %1503 = vsyncpa %s1502, 1
    %1504 = vsyncpa [#allocation8], 1
    %s1505 = scalar_lea.sflag [#allocation8], 1
    %1506 = vsyncpa %s1505, 1
    %1507 = vsyncpa [#allocation11], 1
    %s1508 = scalar_lea.sflag [#allocation11], 1
    %1509 = vsyncpa %s1508, 1
    %1510 = vsyncpa [#allocation6], 1
    %s1511 = scalar_lea.sflag [#allocation6], 1
    %1512 = vsyncpa %s1511, 1

</llo_original>
